<compile_context>
chip_gen: v6e
topology: v6e:2x2x1
jax: 0.10.0
libtpu: 0.0.40
codegen_flags: <defaults>
</compile_context>

<pallas_src>
import functools
import math

import jax
import jax.numpy as jnp
from jax import lax
from jax.experimental import pallas as pl
from jax.experimental.pallas import tpu as pltpu

_LN_EPS = 1e-5
_GELU_C = math.sqrt(2.0 / math.pi)
_GELU_A = 0.044715


def _matmul_nt(a, b):
    """a @ b.T on the MXU without materialising a transpose (contract last dims)."""
    return lax.dot_general(a, b, (((1,), (1,)), ((), ())),
                           preferred_element_type=jnp.float32)


# ---------------------------------------------------------------------------
# Kernel 1: LayerNorm-1 -> SUQ self-attention -> residual add
#   grid = (B, n_head);  head axis = reduction: per-head weight blocks are
#   streamed, mean/variance outputs stay resident and accumulate head by head.
# ---------------------------------------------------------------------------
def _attn_head_kernel(d_head, causal,
                      xm_ref, xv_ref, g1_ref, b1_ref,
                      wqkv_ref, wp_ref, msq_ref,
                      om_ref, ov_ref,
                      em_scr, ev_scr):
    f32, bf16 = jnp.float32, jnp.bfloat16
    T = xm_ref.shape[1]
    h = pl.program_id(1)

    # ---- once per batch element (h == 0): LayerNorm-1 + residual init ----
    @pl.when(h == 0)
    def _():
        xm = xm_ref[0]                                  # (T, D)
        xv = xv_ref[0]
        mu = jnp.mean(xm, axis=-1, keepdims=True)
        var = jnp.mean(jnp.square(xm - mu), axis=-1, keepdims=True)
        rstd = lax.rsqrt(var + _LN_EPS)                 # EUP
        gamma = g1_ref[...]
        em_scr[...] = ((xm - mu) * rstd * gamma + b1_ref[...]).astype(bf16)
        ev_scr[...] = ((rstd * rstd) * (gamma * gamma) * xv).astype(bf16)
        om_ref[0] = xm                                  # residual
        ov_ref[0] = xv

    e_m = em_scr[...]                                   # (T, D) bf16
    e_v = ev_scr[...]                                   # (T, D) bf16

    # ---- per-head fused q/k/v projection (1/sqrt(d_head) folded into Wq rows) ----
    qkv = _matmul_nt(e_m, wqkv_ref[0])                  # (T, 3*d_head) f32
    q_h = qkv[:, :d_head].astype(bf16)
    k_h = qkv[:, d_head:2 * d_head].astype(bf16)
    v_h = qkv[:, 2 * d_head:].astype(bf16)

    # ---- causal softmax: logits / mask / max-subtract / exp / row-sum stay f32 ----
    logits = _matmul_nt(q_h, k_h)                       # (T, T) f32
    if causal:
        row = lax.broadcasted_iota(jnp.int32, (T, T), 0)
        col = lax.broadcasted_iota(jnp.int32, (T, T), 1)
        logits = jnp.where(col <= row, logits, -1e30)
    logits = logits - jnp.max(logits, axis=-1, keepdims=True)
    p = jnp.exp(logits)                                 # un-normalised probabilities
    row_sum = jnp.sum(p, axis=-1, keepdims=True)        # (T, 1)

    # Deferred softmax normalisation: O(T) reciprocals instead of O(T^2) divides.
    # approx=True (EUP) on the mean path is within the 3e-2 tolerance; the
    # (strictly positive) variance path uses the exact reciprocal.
    inv = pl.reciprocal(row_sum, approx=True)
    inv2 = pl.reciprocal(row_sum * row_sum, approx=False)

    p_bf = p.astype(bf16)                               # cast once, reuse
    psq_bf = p_bf * p_bf

    # mean path:  out_mean += ((p @ v_h) / rowsum) @ Wp_h.T   (bf16 MXU, f32 acc)
    y_h = (jnp.dot(p_bf, v_h, preferred_element_type=f32) * inv).astype(bf16)
    om_ref[0] += _matmul_nt(y_h, wp_ref[0])             # (T, D)

    # variance path:  out_var += (p^2 @ (x_var_ln @ Msq_h.T)) / rowsum^2
    #                 Msq_h = (Wp_h @ Wv_h)**2, bf16 operands, f32 accumulation
    g_h = _matmul_nt(e_v, msq_ref[0]).astype(bf16)      # (T, D)
    ov_ref[0] += jnp.dot(psq_bf, g_h, preferred_element_type=f32) * inv2


# ---------------------------------------------------------------------------
# Kernel 2: LayerNorm-2 -> SUQ MLP (fc -> GELU -> proj) -> residual add
#   grid = (B, H // tH);  H-tile axis = reduction for the output projection.
# ---------------------------------------------------------------------------
def _mlp_tile_kernel(xm_ref, xv_ref, g2_ref, b2_ref,
                     wfc_ref, bfc_ref, wfcsq_ref,
                     wpr_ref, bpr_ref, wprsq_ref,
                     om_ref, ov_ref,
                     em_scr, ev_scr):
    f32, bf16 = jnp.float32, jnp.bfloat16
    j = pl.program_id(1)

    # ---- once per batch element (j == 0): LayerNorm-2 + residual/bias init ----
    @pl.when(j == 0)
    def _():
        xm = xm_ref[0]
        xv = xv_ref[0]
        mu = jnp.mean(xm, axis=-1, keepdims=True)
        var = jnp.mean(jnp.square(xm - mu), axis=-1, keepdims=True)
        rstd = lax.rsqrt(var + _LN_EPS)
        gamma = g2_ref[...]
        em_scr[...] = ((xm - mu) * rstd * gamma + b2_ref[...]).astype(bf16)
        ev_scr[...] = ((rstd * rstd) * (gamma * gamma) * xv).astype(bf16)
        om_ref[0] = xm + bpr_ref[...]                   # residual + c_proj bias (added once)
        ov_ref[0] = xv

    e_m = em_scr[...]                                   # (T, D) bf16
    e_v = ev_scr[...]                                   # (T, D) bf16

    # c_fc tile: mean + diag variance (bf16 MXU operands, f32 accumulation)
    h_m = _matmul_nt(e_m, wfc_ref[...]) + bfc_ref[...]  # (T, tH) f32
    h_v = _matmul_nt(e_v, wfcsq_ref[...])               # (T, tH) f32

    # tanh-GELU mean + first-order Taylor variance (closed-form derivative)
    hm2 = h_m * h_m
    u = _GELU_C * (h_m + _GELU_A * hm2 * h_m)
    t = jnp.tanh(u)                                     # EUP
    a_m = 0.5 * h_m * (1.0 + t)
    du = _GELU_C * (1.0 + 3.0 * _GELU_A * hm2)
    nabla = 0.5 * (1.0 + t) + 0.5 * h_m * (1.0 - t * t) * du
    a_v = nabla * nabla * h_v

    # c_proj tile: accumulate into the resident output blocks
    om_ref[0] += _matmul_nt(a_m.astype(bf16), wpr_ref[...])     # (T, D)
    ov_ref[0] += _matmul_nt(a_v.astype(bf16), wprsq_ref[...])   # (T, D)


# ---------------------------------------------------------------------------
# Wrapper
# ---------------------------------------------------------------------------
def _vmem_limit(block_bytes):
    """Generation-aware VMEM limit: ~100 MiB on 128-MiB parts, 56 MiB cap on v7x."""
    try:
        cap = int(getattr(pltpu.get_tpu_info(), "vmem_capacity_bytes", 64 * 2 ** 20))
    except Exception:  # pragma: no cover - conservative fallback
        cap = 64 * 2 ** 20
    ceiling = 100 * 2 ** 20 if cap >= 96 * 2 ** 20 else 56 * 2 ** 20
    return int(min(ceiling, max(32 * 2 ** 20, 2 * block_bytes)))


def _pick_h_tile(H):
    for cand in (512, 256, 128):
        if H % cand == 0 and H > cand:
            return cand
    return H


def suq_transformer_block(x_mean, x_var,
                          ln1_w, ln1_b, Wq, Wk, Wv, Wp,
                          ln2_w, ln2_b, Wfc, bfc, Wproj, bproj,
                          n_head, causal=True):
    """Pallas implementation of SUQ_Transformer_Block_Diag.forward (deterministic, diag_cov=False)."""
    B, T, D = x_mean.shape
    assert D % n_head == 0
    d_head = D // n_head
    H = Wfc.shape[0]
    f32, bf16 = jnp.float32, jnp.bfloat16

    x_mean = x_mean.astype(f32)
    x_var = x_var.astype(f32)

    # ------ batch-invariant weight prep, hoisted out of the kernels ------
    scale = 1.0 / math.sqrt(d_head)
    Wq_h = (Wq.astype(f32) * scale).reshape(n_head, d_head, D)
    Wk_h = Wk.astype(f32).reshape(n_head, d_head, D)
    Wv_h = Wv.astype(f32).reshape(n_head, d_head, D)
    Wqkv_heads = jnp.concatenate([Wq_h, Wk_h, Wv_h], axis=1).astype(bf16)    # (n_h, 3*dh, D)
    Wp_heads = Wp.astype(f32).reshape(D, n_head, d_head).transpose(1, 0, 2).astype(bf16)  # (n_h, D, dh)
    # Msq_heads[h] = ((Wp[:, h-th slice] @ Wv[h-th slice, :]) ** 2)  -- exact head-wise projector
    M = jnp.einsum('ohi,hid->hod',
                   Wp.astype(f32).reshape(D, n_head, d_head),
                   Wv.astype(f32).reshape(n_head, d_head, D))                # (n_h, D, D)
    Msq_heads = jnp.square(M).astype(bf16)

    g1 = ln1_w.reshape(1, D).astype(f32)
    b1 = ln1_b.reshape(1, D).astype(f32)
    g2 = ln2_w.reshape(1, D).astype(f32)
    b2 = ln2_b.reshape(1, D).astype(f32)
    Wfc_bf = Wfc.astype(bf16)                                                # (H, D)
    Wfc_sq = jnp.square(Wfc.astype(f32)).astype(bf16)
    Wpr_bf = Wproj.astype(bf16)                                              # (D, H)
    Wpr_sq = jnp.square(Wproj.astype(f32)).astype(bf16)
    bfc2 = bfc.reshape(1, H).astype(f32)
    bpr2 = bproj.reshape(1, D).astype(f32)

    act_spec = pl.BlockSpec((1, T, D), lambda b, i: (b, 0, 0))
    vec_d = pl.BlockSpec((1, D), lambda b, i: (0, 0))

    # ------------------- kernel 1: LN1 + attention + residual -------------------
    attn_block_bytes = (
        2 * 4 * T * D * 4                                   # double-buffered act in/out blocks
        + 2 * (3 * d_head * D + D * d_head + D * D) * 2     # per-head bf16 weight blocks (x2 buf)
        + 2 * T * D * 2                                      # e_m / e_v bf16 scratch
        + 5 * T * T * 4                                      # logits / mask / p / p^2 temporaries
        + (3 * T * d_head + 2 * T * D) * 4)                  # qkv / y / g temporaries
    attn_cost = pl.CostEstimate(
        flops=int(B * (8 * T * D * D + (4 + 2 * n_head) * T * T * D
                       + 2 * n_head * T * D * D)),
        transcendentals=int(B * (n_head * (T * T + 3 * T) + T)),
        bytes_accessed=int(B * (4 * T * D * 4
                                + n_head * (4 * d_head * D + D * D) * 2) + 4 * D * 4))

    h_mean, h_var = pl.pallas_call(
        functools.partial(_attn_head_kernel, d_head, causal),
        out_shape=[jax.ShapeDtypeStruct((B, T, D), f32),
                   jax.ShapeDtypeStruct((B, T, D), f32)],
        grid_spec=pltpu.PrefetchScalarGridSpec(
            num_scalar_prefetch=0,
            grid=(B, n_head),
            in_specs=[act_spec, act_spec, vec_d, vec_d,
                      pl.BlockSpec((1, 3 * d_head, D), lambda b, h: (h, 0, 0)),
                      pl.BlockSpec((1, D, d_head), lambda b, h: (h, 0, 0)),
                      pl.BlockSpec((1, D, D), lambda b, h: (h, 0, 0))],
            out_specs=[act_spec, act_spec],
            scratch_shapes=[pltpu.VMEM((T, D), bf16),
                            pltpu.VMEM((T, D), bf16)],
        ),
        compiler_params=pltpu.CompilerParams(
            dimension_semantics=("parallel", "arbitrary"),
            vmem_limit_bytes=_vmem_limit(attn_block_bytes)),
        cost_estimate=attn_cost,
    )(x_mean, x_var, g1, b1, Wqkv_heads, Wp_heads, Msq_heads)

    # ------------------- kernel 2: LN2 + MLP + residual -------------------
    tH = _pick_h_tile(H)
    n_ht = H // tH
    mlp_block_bytes = (
        2 * 4 * T * D * 4                                    # double-buffered act in/out blocks
        + 2 * 4 * tH * D * 2                                 # four bf16 weight tiles (x2 buf)
        + 2 * T * D * 2                                      # e_m / e_v bf16 scratch
        + 6 * T * tH * 4                                     # h_m / h_v / gelu temporaries
        + 2 * T * D * 4)                                     # proj partial sums
    mlp_cost = pl.CostEstimate(
        flops=int(B * 8 * T * D * H),
        transcendentals=int(B * (T * H + T)),
        bytes_accessed=int(B * (4 * T * D * 4 + 4 * H * D * 2) + (H + 3 * D) * 4))

    out_mean, out_var = pl.pallas_call(
        _mlp_tile_kernel,
        out_shape=[jax.ShapeDtypeStruct((B, T, D), f32),
                   jax.ShapeDtypeStruct((B, T, D), f32)],
        grid_spec=pltpu.PrefetchScalarGridSpec(
            num_scalar_prefetch=0,
            grid=(B, n_ht),
            in_specs=[act_spec, act_spec, vec_d, vec_d,
                      pl.BlockSpec((tH, D), lambda b, j: (j, 0)),
                      pl.BlockSpec((1, tH), lambda b, j: (0, j)),
                      pl.BlockSpec((tH, D), lambda b, j: (j, 0)),
                      pl.BlockSpec((D, tH), lambda b, j: (0, j)),
                      vec_d,
                      pl.BlockSpec((D, tH), lambda b, j: (0, j))],
            out_specs=[act_spec, act_spec],
            scratch_shapes=[pltpu.VMEM((T, D), bf16),
                            pltpu.VMEM((T, D), bf16)],
        ),
        compiler_params=pltpu.CompilerParams(
            dimension_semantics=("parallel", "arbitrary"),
            vmem_limit_bytes=_vmem_limit(mlp_block_bytes)),
        cost_estimate=mlp_cost,
    )(h_mean, h_var, g2, b2, Wfc_bf, bfc2, Wfc_sq, Wpr_bf, bpr2, Wpr_sq)

    return out_mean, out_var


# ---------------------------------------------------------------------------
# Pure-JAX reference (literal f32 transcription of the PyTorch block) for verification
# ---------------------------------------------------------------------------
def _gelu_tanh(x):
    return 0.5 * x * (1.0 + jnp.tanh(_GELU_C * (x + _GELU_A * x ** 3)))


def _reference_block(x_mean, x_var, ln1_w, ln1_b, Wq, Wk, Wv, Wp,
                     ln2_w, ln2_b, Wfc, bfc, Wproj, bproj, n_head, causal=True):
    B, T, D = x_mean.shape
    d_head = D // n_head

    def layer_norm(m, v, w, b):
        mu = m.mean(-1, keepdims=True)
        s2 = ((m - mu) ** 2).mean(-1, keepdims=True)
        out_m = (m - mu) / jnp.sqrt(s2 + _LN_EPS) * w + b
        out_v = 1.0 / (s2 + _LN_EPS) * w ** 2 * v
        return out_m, out_v

    # ln_1 + attention + residual
    e_m, e_v = layer_norm(x_mean, x_var, ln1_w, ln1_b)
    q = (e_m @ Wq.T).reshape(B, T, n_head, d_head).transpose(0, 2, 1, 3)
    k = (e_m @ Wk.T).reshape(B, T, n_head, d_head).transpose(0, 2, 1, 3)
    v = (e_m @ Wv.T).reshape(B, T, n_head, d_head).transpose(0, 2, 1, 3)
    logits = jnp.einsum('bhtd,bhsd->bhts', q, k) / math.sqrt(d_head)
    if causal:
        mask = jnp.tril(jnp.ones((T, T), bool))
        logits = jnp.where(mask, logits, -1e30)
    att = jax.nn.softmax(logits, axis=-1)
    y = jnp.einsum('bhts,bhsd->bhtd', att, v).transpose(0, 2, 1, 3).reshape(B, T, D)
    attn_mean = y @ Wp.T
    # forward_value_cov_determinstic_W -> forward_QKV_cov -> forward_fuse_multi_head_cov
    Wv_r = Wv.reshape(n_head, d_head, D)
    v_cov = jnp.einsum('hid,btd,hjd->bthij', Wv_r, e_v, Wv_r)
    qkv_cov = jnp.einsum('bhts,bshij->bhtij', att ** 2, v_cov)
    P_r = Wp.reshape(D, n_head, d_head)
    attn_var = jnp.einsum('ohi,ohj,bhtij->bto', P_r, P_r, qkv_cov)
    h_mean = attn_mean + x_mean
    h_var = attn_var + x_var
    old_m, old_v = h_mean, h_var

    # ln_2 + MLP + residual
    e_m, e_v = layer_norm(h_mean, h_var, ln2_w, ln2_b)
    fc_m = e_m @ Wfc.T + bfc
    fc_v = e_v @ (Wfc ** 2).T
    a_m = _gelu_tanh(fc_m)
    nabla = jax.grad(lambda z: jnp.sum(_gelu_tanh(z)))(fc_m)
    a_v = nabla ** 2 * fc_v
    p_m = a_m @ Wproj.T + bproj
    p_v = a_v @ (Wproj ** 2).T
    return p_m + old_m, p_v + old_v


if __name__ == "__main__":
    B, T, D, n_head = 2, 8, 32, 4
    H = 4 * D
    f32 = jnp.float32

    key = jax.random.PRNGKey(0)
    keys = jax.random.split(key, 14)
    x_mean = jax.random.normal(keys[0], (B, T, D), dtype=f32)
    x_var = 0.1 * jax.nn.softplus(jax.random.normal(keys[1], (B, T, D), dtype=f32))
    ln1_w = 1.0 + 0.1 * jax.random.normal(keys[2], (D,), dtype=f32)
    ln1_b = 0.1 * jax.random.normal(keys[3], (D,), dtype=f32)
    Wq = 0.2 * jax.random.normal(keys[4], (D, D), dtype=f32)
    Wk = 0.2 * jax.random.normal(keys[5], (D, D), dtype=f32)
    Wv = 0.2 * jax.random.normal(keys[6], (D, D), dtype=f32)
    Wp = 0.2 * jax.random.normal(keys[7], (D, D), dtype=f32)
    ln2_w = 1.0 + 0.1 * jax.random.normal(keys[8], (D,), dtype=f32)
    ln2_b = 0.1 * jax.random.normal(keys[9], (D,), dtype=f32)
    Wfc = 0.2 * jax.random.normal(keys[10], (H, D), dtype=f32)
    bfc = 0.1 * jax.random.normal(keys[11], (H,), dtype=f32)
    Wproj = 0.2 * jax.random.normal(keys[12], (D, H), dtype=f32)
    bproj = 0.1 * jax.random.normal(keys[13], (D,), dtype=f32)

    block_fn = jax.jit(functools.partial(suq_transformer_block, n_head=n_head, causal=True))
    out_mean, out_var = block_fn(x_mean, x_var, ln1_w, ln1_b, Wq, Wk, Wv, Wp,
                                 ln2_w, ln2_b, Wfc, bfc, Wproj, bproj)
    out_mean = jax.block_until_ready(out_mean)
    out_var = jax.block_until_ready(out_var)

    ref_mean, ref_var = _reference_block(x_mean, x_var, ln1_w, ln1_b, Wq, Wk, Wv, Wp,
                                         ln2_w, ln2_b, Wfc, bfc, Wproj, bproj, n_head)

    assert out_mean.shape == (B, T, D) and out_var.shape == (B, T, D)

    def _scale_err(a, b):
        return float(jnp.max(jnp.abs(a - b)) / (jnp.max(jnp.abs(b)) + 1e-12))

    mean_err = _scale_err(out_mean, ref_mean)
    var_err = _scale_err(out_var, ref_var)
    # bf16 MXU operands (mean and variance paths) -> scale-relative tolerances
    assert mean_err < 3e-2, f"mean mismatch: {mean_err}"
    assert var_err < 6e-2, f"var mismatch: {var_err}"

    print("KERNEL_OK")
</pallas_src>

<mosaic_0001>
module attributes {stable_mosaic.version = 11 : i64} {
  func.func @_attn_head_kernel(%arg0: i32, %arg1: i32, %arg2: memref<1x8x32xf32, #tpu.memory_space<vmem>>, %arg3: memref<1x8x32xf32, #tpu.memory_space<vmem>>, %arg4: memref<1x32xf32, #tpu.memory_space<vmem>>, %arg5: memref<1x32xf32, #tpu.memory_space<vmem>>, %arg6: memref<1x24x32xbf16, #tpu.memory_space<vmem>>, %arg7: memref<1x32x8xbf16, #tpu.memory_space<vmem>>, %arg8: memref<1x32x32xbf16, #tpu.memory_space<vmem>>, %arg9: memref<1x8x32xf32, #tpu.memory_space<vmem>>, %arg10: memref<1x8x32xf32, #tpu.memory_space<vmem>>, %arg11: memref<8x32xbf16, #tpu.memory_space<vmem>>, %arg12: memref<8x32xbf16, #tpu.memory_space<vmem>>) attributes {dimension_semantics = [#tpu.dimension_semantics<parallel>, #tpu.dimension_semantics<arbitrary>], iteration_bounds = array<i64: 2, 4>, scalar_prefetch = 0 : i64, scratch_operands = 2 : i64, tpu.core_type = #tpu.core_type<tc>, window_params = [{transform_indices = @transform_0, window_bounds = array<i64: 1, 8, 32>}, {transform_indices = @transform_1, window_bounds = array<i64: 1, 8, 32>}, {pipeline_mode = #tpu.pipeline_mode<synchronous>, transform_indices = @transform_2, window_bounds = array<i64: 1, 32>}, {pipeline_mode = #tpu.pipeline_mode<synchronous>, transform_indices = @transform_3, window_bounds = array<i64: 1, 32>}, {transform_indices = @transform_4, window_bounds = array<i64: 1, 24, 32>}, {transform_indices = @transform_5, window_bounds = array<i64: 1, 32, 8>}, {transform_indices = @transform_6, window_bounds = array<i64: 1, 32, 32>}, {transform_indices = @transform_7, window_bounds = array<i64: 1, 8, 32>}, {transform_indices = @transform_8, window_bounds = array<i64: 1, 8, 32>}]} {
    %c0_i32 = arith.constant 0 : i32
    %0 = arith.cmpi eq, %arg1, %c0_i32 : i32
    %1 = arith.extui %0 : i1 to i32
    %c0_i32_0 = arith.constant 0 : i32
    %2 = arith.cmpi ne, %1, %c0_i32_0 : i32
    scf.if %2 {
      %c0_33 = arith.constant 0 : index
      %c0_34 = arith.constant 0 : index
      %c0_35 = arith.constant 0 : index
      %58 = vector.load %arg2[%c0_33, %c0_34, %c0_35] : memref<1x8x32xf32, #tpu.memory_space<vmem>>, vector<1x8x32xf32>
      %59 = vector.shape_cast %58 : vector<1x8x32xf32> to vector<8x32xf32>
      %c0_36 = arith.constant 0 : index
      %c0_37 = arith.constant 0 : index
      %c0_38 = arith.constant 0 : index
      %60 = vector.load %arg3[%c0_36, %c0_37, %c0_38] : memref<1x8x32xf32, #tpu.memory_space<vmem>>, vector<1x8x32xf32>
      %61 = vector.shape_cast %60 : vector<1x8x32xf32> to vector<8x32xf32>
      %cst_39 = arith.constant dense<0.000000e+00> : vector<8xf32>
      %62 = vector.multi_reduction <add>, %59, %cst_39 [1] : vector<8x32xf32> to vector<8xf32>
      %63 = vector.shape_cast %62 : vector<8xf32> to vector<8x1xf32>
      %cst_40 = arith.constant 3.200000e+01 : f32
      %64 = vector.broadcast %cst_40 : f32 to vector<8x1xf32>
      %65 = arith.divf %63, %64 : vector<8x1xf32>
      %66 = vector.broadcast %65 : vector<8x1xf32> to vector<8x32xf32>
      %67 = arith.subf %59, %66 : vector<8x32xf32>
      %68 = arith.mulf %67, %67 : vector<8x32xf32>
      %cst_41 = arith.constant dense<0.000000e+00> : vector<8xf32>
      %69 = vector.multi_reduction <add>, %68, %cst_41 [1] : vector<8x32xf32> to vector<8xf32>
      %70 = vector.shape_cast %69 : vector<8xf32> to vector<8x1xf32>
      %cst_42 = arith.constant 3.200000e+01 : f32
      %71 = vector.broadcast %cst_42 : f32 to vector<8x1xf32>
      %72 = arith.divf %70, %71 : vector<8x1xf32>
      %cst_43 = arith.constant 9.99999974E-6 : f32
      %73 = vector.broadcast %cst_43 : f32 to vector<8x1xf32>
      %74 = arith.addf %72, %73 : vector<8x1xf32>
      %75 = math.rsqrt %74 : vector<8x1xf32>
      %c0_44 = arith.constant 0 : index
      %c0_45 = arith.constant 0 : index
      %76 = vector.load %arg4[%c0_44, %c0_45] : memref<1x32xf32, #tpu.memory_space<vmem>>, vector<1x32xf32>
      %77 = vector.broadcast %65 : vector<8x1xf32> to vector<8x32xf32>
      %78 = arith.subf %59, %77 : vector<8x32xf32>
      %79 = vector.broadcast %75 : vector<8x1xf32> to vector<8x32xf32>
      %80 = arith.mulf %78, %79 : vector<8x32xf32>
      %81 = vector.broadcast %76 : vector<1x32xf32> to vector<8x32xf32>
      %82 = arith.mulf %80, %81 : vector<8x32xf32>
      %c0_46 = arith.constant 0 : index
      %c0_47 = arith.constant 0 : index
      %83 = vector.load %arg5[%c0_46, %c0_47] : memref<1x32xf32, #tpu.memory_space<vmem>>, vector<1x32xf32>
      %84 = vector.broadcast %83 : vector<1x32xf32> to vector<8x32xf32>
      %85 = arith.addf %82, %84 : vector<8x32xf32>
      %86 = arith.truncf %85 : vector<8x32xf32> to vector<8x32xbf16>
      %c0_48 = arith.constant 0 : index
      %c0_49 = arith.constant 0 : index
      %87 = vector.load %arg11[%c0_48, %c0_49] : memref<8x32xbf16, #tpu.memory_space<vmem>>, vector<8x32xbf16>
      tpu.vector_store %arg11[%c0_48, %c0_49], %86 {strides = array<i32>} : memref<8x32xbf16, #tpu.memory_space<vmem>>, vector<8x32xbf16>,
      %88 = arith.mulf %75, %75 : vector<8x1xf32>
      %89 = arith.mulf %76, %76 : vector<1x32xf32>
      %90 = vector.broadcast %88 : vector<8x1xf32> to vector<8x32xf32>
      %91 = vector.broadcast %89 : vector<1x32xf32> to vector<8x32xf32>
      %92 = arith.mulf %90, %91 : vector<8x32xf32>
      %93 = arith.mulf %92, %61 : vector<8x32xf32>
      %94 = arith.truncf %93 : vector<8x32xf32> to vector<8x32xbf16>
      %c0_50 = arith.constant 0 : index
      %c0_51 = arith.constant 0 : index
      %95 = vector.load %arg12[%c0_50, %c0_51] : memref<8x32xbf16, #tpu.memory_space<vmem>>, vector<8x32xbf16>
      tpu.vector_store %arg12[%c0_50, %c0_51], %94 {strides = array<i32>} : memref<8x32xbf16, #tpu.memory_space<vmem>>, vector<8x32xbf16>,
      %c0_52 = arith.constant 0 : index
      %c0_53 = arith.constant 0 : index
      %c0_54 = arith.constant 0 : index
      %96 = vector.load %arg9[%c0_52, %c0_53, %c0_54] : memref<1x8x32xf32, #tpu.memory_space<vmem>>, vector<1x8x32xf32>
      %97 = vector.shape_cast %96 : vector<1x8x32xf32> to vector<8x32xf32>
      %98 = vector.shape_cast %59 : vector<8x32xf32> to vector<1x8x32xf32>
      tpu.vector_store %arg9[%c0_52, %c0_53, %c0_54], %98 {strides = array<i32>} : memref<1x8x32xf32, #tpu.memory_space<vmem>>, vector<1x8x32xf32>,
      %c0_55 = arith.constant 0 : index
      %c0_56 = arith.constant 0 : index
      %c0_57 = arith.constant 0 : index
      %99 = vector.load %arg10[%c0_55, %c0_56, %c0_57] : memref<1x8x32xf32, #tpu.memory_space<vmem>>, vector<1x8x32xf32>
      %100 = vector.shape_cast %99 : vector<1x8x32xf32> to vector<8x32xf32>
      %101 = vector.shape_cast %61 : vector<8x32xf32> to vector<1x8x32xf32>
      tpu.vector_store %arg10[%c0_55, %c0_56, %c0_57], %101 {strides = array<i32>} : memref<1x8x32xf32, #tpu.memory_space<vmem>>, vector<1x8x32xf32>,
    } else {
    }
    %c0 = arith.constant 0 : index
    %c0_1 = arith.constant 0 : index
    %3 = vector.load %arg11[%c0, %c0_1] : memref<8x32xbf16, #tpu.memory_space<vmem>>, vector<8x32xbf16>
    %c0_2 = arith.constant 0 : index
    %c0_3 = arith.constant 0 : index
    %4 = vector.load %arg12[%c0_2, %c0_3] : memref<8x32xbf16, #tpu.memory_space<vmem>>, vector<8x32xbf16>
    %c0_4 = arith.constant 0 : index
    %c0_5 = arith.constant 0 : index
    %c0_6 = arith.constant 0 : index
    %5 = vector.load %arg6[%c0_4, %c0_5, %c0_6] : memref<1x24x32xbf16, #tpu.memory_space<vmem>>, vector<1x24x32xbf16>
    %6 = vector.shape_cast %5 : vector<1x24x32xbf16> to vector<24x32xbf16>
    %cst = arith.constant dense<0.000000e+00> : vector<8x24xf32>
    %7 = tpu.matmul %3, %6, %cst {dimension_numbers = #tpu.dot_dimension_numbers<[1], [1], [0], [0], [0, 0, 1, 0], [], []>} : vector<8x32xbf16>, vector<24x32xbf16>, vector<8x24xf32> -> vector<8x24xf32>
    %8 = vector.extract_strided_slice %7 {offsets = [0, 0], sizes = [8, 8], strides = [1, 1]} : vector<8x24xf32> to vector<8x8xf32>
    %9 = arith.truncf %8 : vector<8x8xf32> to vector<8x8xbf16>
    %10 = vector.extract_strided_slice %7 {offsets = [0, 8], sizes = [8, 8], strides = [1, 1]} : vector<8x24xf32> to vector<8x8xf32>
    %11 = arith.truncf %10 : vector<8x8xf32> to vector<8x8xbf16>
    %12 = vector.extract_strided_slice %7 {offsets = [0, 16], sizes = [8, 8], strides = [1, 1]} : vector<8x24xf32> to vector<8x8xf32>
    %13 = arith.truncf %12 : vector<8x8xf32> to vector<8x8xbf16>
    %cst_7 = arith.constant dense<0.000000e+00> : vector<8x8xf32>
    %14 = tpu.matmul %9, %11, %cst_7 {dimension_numbers = #tpu.dot_dimension_numbers<[1], [1], [0], [0], [0, 0, 1, 0], [], []>} : vector<8x8xbf16>, vector<8x8xbf16>, vector<8x8xf32> -> vector<8x8xf32>
    %15 = tpu.iota {dimensions = array<i32: 0>} : vector<8x8xi32>
    %16 = tpu.iota {dimensions = array<i32: 1>} : vector<8x8xi32>
    %17 = arith.cmpi sle, %16, %15 : vector<8x8xi32>
    %cst_8 = arith.constant -1.000000e+30 : f32
    %18 = vector.broadcast %cst_8 : f32 to vector<8x8xf32>
    %19 = arith.select %17, %14, %18 : vector<8x8xi1>, vector<8x8xf32>
    %cst_9 = arith.constant dense<0xFF800000> : vector<8xf32>
    %20 = vector.multi_reduction <maximumf>, %19, %cst_9 [1] : vector<8x8xf32> to vector<8xf32>
    %21 = vector.shape_cast %20 : vector<8xf32> to vector<8x1xf32>
    %22 = vector.broadcast %21 : vector<8x1xf32> to vector<8x8xf32>
    %23 = arith.subf %19, %22 : vector<8x8xf32>
    %24 = math.exp %23 : vector<8x8xf32>
    %cst_10 = arith.constant dense<0.000000e+00> : vector<8xf32>
    %25 = vector.multi_reduction <add>, %24, %cst_10 [1] : vector<8x8xf32> to vector<8xf32>
    %26 = vector.shape_cast %25 : vector<8xf32> to vector<8x1xf32>
    %27 = tpu.reciprocal %26 {approx = true} : vector<8x1xf32> -> vector<8x1xf32>
    %28 = arith.mulf %26, %26 : vector<8x1xf32>
    %29 = tpu.reciprocal %28 : vector<8x1xf32> -> vector<8x1xf32>
    %30 = arith.truncf %24 : vector<8x8xf32> to vector<8x8xbf16>
    %31 = arith.mulf %30, %30 : vector<8x8xbf16>
    %cst_11 = arith.constant dense<0.000000e+00> : vector<8x8xf32>
    %32 = tpu.matmul %30, %13, %cst_11 {dimension_numbers = #tpu.dot_dimension_numbers<[1], [0], [0], [1], [0, 0, 1, 1], [], []>} : vector<8x8xbf16>, vector<8x8xbf16>, vector<8x8xf32> -> vector<8x8xf32>
    %33 = vector.broadcast %27 : vector<8x1xf32> to vector<8x8xf32>
    %34 = arith.mulf %32, %33 : vector<8x8xf32>
    %35 = arith.truncf %34 : vector<8x8xf32> to vector<8x8xbf16>
    %c0_12 = arith.constant 0 : index
    %c0_13 = arith.constant 0 : index
    %c0_14 = arith.constant 0 : index
    %36 = vector.load %arg9[%c0_12, %c0_13, %c0_14] : memref<1x8x32xf32, #tpu.memory_space<vmem>>, vector<1x8x32xf32>
    %37 = vector.shape_cast %36 : vector<1x8x32xf32> to vector<8x32xf32>
    %c0_15 = arith.constant 0 : index
    %c0_16 = arith.constant 0 : index
    %c0_17 = arith.constant 0 : index
    %38 = vector.load %arg7[%c0_15, %c0_16, %c0_17] : memref<1x32x8xbf16, #tpu.memory_space<vmem>>, vector<1x32x8xbf16>
    %39 = vector.shape_cast %38 : vector<1x32x8xbf16> to vector<32x8xbf16>
    %cst_18 = arith.constant dense<0.000000e+00> : vector<8x32xf32>
    %40 = tpu.matmul %35, %39, %cst_18 {dimension_numbers = #tpu.dot_dimension_numbers<[1], [1], [0], [0], [0, 0, 1, 0], [], []>} : vector<8x8xbf16>, vector<32x8xbf16>, vector<8x32xf32> -> vector<8x32xf32>
    %41 = arith.addf %37, %40 : vector<8x32xf32>
    %c0_19 = arith.constant 0 : index
    %c0_20 = arith.constant 0 : index
    %c0_21 = arith.constant 0 : index
    %42 = vector.load %arg9[%c0_19, %c0_20, %c0_21] : memref<1x8x32xf32, #tpu.memory_space<vmem>>, vector<1x8x32xf32>
    %43 = vector.shape_cast %42 : vector<1x8x32xf32> to vector<8x32xf32>
    %44 = vector.shape_cast %41 : vector<8x32xf32> to vector<1x8x32xf32>
    tpu.vector_store %arg9[%c0_19, %c0_20, %c0_21], %44 {strides = array<i32>} : memref<1x8x32xf32, #tpu.memory_space<vmem>>, vector<1x8x32xf32>,
    %c0_22 = arith.constant 0 : index
    %c0_23 = arith.constant 0 : index
    %c0_24 = arith.constant 0 : index
    %45 = vector.load %arg8[%c0_22, %c0_23, %c0_24] : memref<1x32x32xbf16, #tpu.memory_space<vmem>>, vector<1x32x32xbf16>
    %46 = vector.shape_cast %45 : vector<1x32x32xbf16> to vector<32x32xbf16>
    %cst_25 = arith.constant dense<0.000000e+00> : vector<8x32xf32>
    %47 = tpu.matmul %4, %46, %cst_25 {dimension_numbers = #tpu.dot_dimension_numbers<[1], [1], [0], [0], [0, 0, 1, 0], [], []>} : vector<8x32xbf16>, vector<32x32xbf16>, vector<8x32xf32> -> vector<8x32xf32>
    %48 = arith.truncf %47 : vector<8x32xf32> to vector<8x32xbf16>
    %c0_26 = arith.constant 0 : index
    %c0_27 = arith.constant 0 : index
    %c0_28 = arith.constant 0 : index
    %49 = vector.load %arg10[%c0_26, %c0_27, %c0_28] : memref<1x8x32xf32, #tpu.memory_space<vmem>>, vector<1x8x32xf32>
    %50 = vector.shape_cast %49 : vector<1x8x32xf32> to vector<8x32xf32>
    %cst_29 = arith.constant dense<0.000000e+00> : vector<8x32xf32>
    %51 = tpu.matmul %31, %48, %cst_29 {dimension_numbers = #tpu.dot_dimension_numbers<[1], [0], [0], [1], [0, 0, 1, 1], [], []>} : vector<8x8xbf16>, vector<8x32xbf16>, vector<8x32xf32> -> vector<8x32xf32>
    %52 = vector.broadcast %29 : vector<8x1xf32> to vector<8x32xf32>
    %53 = arith.mulf %51, %52 : vector<8x32xf32>
    %54 = arith.addf %50, %53 : vector<8x32xf32>
    %c0_30 = arith.constant 0 : index
    %c0_31 = arith.constant 0 : index
    %c0_32 = arith.constant 0 : index
    %55 = vector.load %arg10[%c0_30, %c0_31, %c0_32] : memref<1x8x32xf32, #tpu.memory_space<vmem>>, vector<1x8x32xf32>
    %56 = vector.shape_cast %55 : vector<1x8x32xf32> to vector<8x32xf32>
    %57 = vector.shape_cast %54 : vector<8x32xf32> to vector<1x8x32xf32>
    tpu.vector_store %arg10[%c0_30, %c0_31, %c0_32], %57 {strides = array<i32>} : memref<1x8x32xf32, #tpu.memory_space<vmem>>, vector<1x8x32xf32>,
    return
  }
  func.func @transform_0(%arg0: i32, %arg1: i32) -> (i32, i32, i32) {
    %c0_i32 = arith.constant 0 : i32
    %c0_i32_0 = arith.constant 0 : i32
    %c0_i32_1 = arith.constant 0 : i32
    return %arg0, %c0_i32, %c0_i32_0 : i32, i32, i32
  }
  func.func @transform_1(%arg0: i32, %arg1: i32) -> (i32, i32, i32) {
    %c0_i32 = arith.constant 0 : i32
    %c0_i32_0 = arith.constant 0 : i32
    %c0_i32_1 = arith.constant 0 : i32
    return %arg0, %c0_i32, %c0_i32_0 : i32, i32, i32
  }
  func.func @transform_2(%arg0: i32, %arg1: i32) -> (i32, i32) {
    %c0_i32 = arith.constant 0 : i32
    %c0_i32_0 = arith.constant 0 : i32
    %c0_i32_1 = arith.constant 0 : i32
    return %c0_i32, %c0_i32_0 : i32, i32
  }
  func.func @transform_3(%arg0: i32, %arg1: i32) -> (i32, i32) {
    %c0_i32 = arith.constant 0 : i32
    %c0_i32_0 = arith.constant 0 : i32
    %c0_i32_1 = arith.constant 0 : i32
    return %c0_i32, %c0_i32_0 : i32, i32
  }
  func.func @transform_4(%arg0: i32, %arg1: i32) -> (i32, i32, i32) {
    %c0_i32 = arith.constant 0 : i32
    %c0_i32_0 = arith.constant 0 : i32
    %c0_i32_1 = arith.constant 0 : i32
    return %arg1, %c0_i32, %c0_i32_0 : i32, i32, i32
  }
  func.func @transform_5(%arg0: i32, %arg1: i32) -> (i32, i32, i32) {
    %c0_i32 = arith.constant 0 : i32
    %c0_i32_0 = arith.constant 0 : i32
    %c0_i32_1 = arith.constant 0 : i32
    return %arg1, %c0_i32, %c0_i32_0 : i32, i32, i32
  }
  func.func @transform_6(%arg0: i32, %arg1: i32) -> (i32, i32, i32) {
    %c0_i32 = arith.constant 0 : i32
    %c0_i32_0 = arith.constant 0 : i32
    %c0_i32_1 = arith.constant 0 : i32
    return %arg1, %c0_i32, %c0_i32_0 : i32, i32, i32
  }
  func.func @transform_7(%arg0: i32, %arg1: i32) -> (i32, i32, i32) {
    %c0_i32 = arith.constant 0 : i32
    %c0_i32_0 = arith.constant 0 : i32
    %c0_i32_1 = arith.constant 0 : i32
    return %arg0, %c0_i32, %c0_i32_0 : i32, i32, i32
  }
  func.func @transform_8(%arg0: i32, %arg1: i32) -> (i32, i32, i32) {
    %c0_i32 = arith.constant 0 : i32
    %c0_i32_0 = arith.constant 0 : i32
    %c0_i32_1 = arith.constant 0 : i32
    return %arg0, %c0_i32, %c0_i32_0 : i32, i32, i32
  }
}

module attributes {stable_mosaic.version = 11 : i64} {
  func.func @_mlp_tile_kernel(%arg0: i32, %arg1: i32, %arg2: memref<1x8x32xf32, #tpu.memory_space<vmem>>, %arg3: memref<1x8x32xf32, #tpu.memory_space<vmem>>, %arg4: memref<1x32xf32, #tpu.memory_space<vmem>>, %arg5: memref<1x32xf32, #tpu.memory_space<vmem>>, %arg6: memref<128x32xbf16, #tpu.memory_space<vmem>>, %arg7: memref<1x128xf32, #tpu.memory_space<vmem>>, %arg8: memref<128x32xbf16, #tpu.memory_space<vmem>>, %arg9: memref<32x128xbf16, #tpu.memory_space<vmem>>, %arg10: memref<1x32xf32, #tpu.memory_space<vmem>>, %arg11: memref<32x128xbf16, #tpu.memory_space<vmem>>, %arg12: memref<1x8x32xf32, #tpu.memory_space<vmem>>, %arg13: memref<1x8x32xf32, #tpu.memory_space<vmem>>, %arg14: memref<8x32xbf16, #tpu.memory_space<vmem>>, %arg15: memref<8x32xbf16, #tpu.memory_space<vmem>>) attributes {dimension_semantics = [#tpu.dimension_semantics<parallel>, #tpu.dimension_semantics<arbitrary>], iteration_bounds = array<i64: 2, 1>, scalar_prefetch = 0 : i64, scratch_operands = 2 : i64, tpu.core_type = #tpu.core_type<tc>, window_params = [{transform_indices = @transform_0, window_bounds = array<i64: 1, 8, 32>}, {transform_indices = @transform_1, window_bounds = array<i64: 1, 8, 32>}, {pipeline_mode = #tpu.pipeline_mode<synchronous>, transform_indices = @transform_2, window_bounds = array<i64: 1, 32>}, {pipeline_mode = #tpu.pipeline_mode<synchronous>, transform_indices = @transform_3, window_bounds = array<i64: 1, 32>}, {transform_indices = @transform_4, window_bounds = array<i64: 128, 32>}, {transform_indices = @transform_5, window_bounds = array<i64: 1, 128>}, {transform_indices = @transform_6, window_bounds = array<i64: 128, 32>}, {transform_indices = @transform_7, window_bounds = array<i64: 32, 128>}, {pipeline_mode = #tpu.pipeline_mode<synchronous>, transform_indices = @transform_8, window_bounds = array<i64: 1, 32>}, {transform_indices = @transform_9, window_bounds = array<i64: 32, 128>}, {transform_indices = @transform_10, window_bounds = array<i64: 1, 8, 32>}, {transform_indices = @transform_11, window_bounds = array<i64: 1, 8, 32>}]} {
    %c0_i32 = arith.constant 0 : i32
    %0 = arith.cmpi eq, %arg1, %c0_i32 : i32
    %1 = arith.extui %0 : i1 to i32
    %c0_i32_0 = arith.constant 0 : i32
    %2 = arith.cmpi ne, %1, %c0_i32_0 : i32
    scf.if %2 {
      %c0_40 = arith.constant 0 : index
      %c0_41 = arith.constant 0 : index
      %c0_42 = arith.constant 0 : index
      %63 = vector.load %arg2[%c0_40, %c0_41, %c0_42] : memref<1x8x32xf32, #tpu.memory_space<vmem>>, vector<1x8x32xf32>
      %64 = vector.shape_cast %63 : vector<1x8x32xf32> to vector<8x32xf32>
      %c0_43 = arith.constant 0 : index
      %c0_44 = arith.constant 0 : index
      %c0_45 = arith.constant 0 : index
      %65 = vector.load %arg3[%c0_43, %c0_44, %c0_45] : memref<1x8x32xf32, #tpu.memory_space<vmem>>, vector<1x8x32xf32>
      %66 = vector.shape_cast %65 : vector<1x8x32xf32> to vector<8x32xf32>
      %cst_46 = arith.constant dense<0.000000e+00> : vector<8xf32>
      %67 = vector.multi_reduction <add>, %64, %cst_46 [1] : vector<8x32xf32> to vector<8xf32>
      %68 = vector.shape_cast %67 : vector<8xf32> to vector<8x1xf32>
      %cst_47 = arith.constant 3.200000e+01 : f32
      %69 = vector.broadcast %cst_47 : f32 to vector<8x1xf32>
      %70 = arith.divf %68, %69 : vector<8x1xf32>
      %71 = vector.broadcast %70 : vector<8x1xf32> to vector<8x32xf32>
      %72 = arith.subf %64, %71 : vector<8x32xf32>
      %73 = arith.mulf %72, %72 : vector<8x32xf32>
      %cst_48 = arith.constant dense<0.000000e+00> : vector<8xf32>
      %74 = vector.multi_reduction <add>, %73, %cst_48 [1] : vector<8x32xf32> to vector<8xf32>
      %75 = vector.shape_cast %74 : vector<8xf32> to vector<8x1xf32>
      %cst_49 = arith.constant 3.200000e+01 : f32
      %76 = vector.broadcast %cst_49 : f32 to vector<8x1xf32>
      %77 = arith.divf %75, %76 : vector<8x1xf32>
      %cst_50 = arith.constant 9.99999974E-6 : f32
      %78 = vector.broadcast %cst_50 : f32 to vector<8x1xf32>
      %79 = arith.addf %77, %78 : vector<8x1xf32>
      %80 = math.rsqrt %79 : vector<8x1xf32>
      %c0_51 = arith.constant 0 : index
      %c0_52 = arith.constant 0 : index
      %81 = vector.load %arg4[%c0_51, %c0_52] : memref<1x32xf32, #tpu.memory_space<vmem>>, vector<1x32xf32>
      %82 = vector.broadcast %70 : vector<8x1xf32> to vector<8x32xf32>
      %83 = arith.subf %64, %82 : vector<8x32xf32>
      %84 = vector.broadcast %80 : vector<8x1xf32> to vector<8x32xf32>
      %85 = arith.mulf %83, %84 : vector<8x32xf32>
      %86 = vector.broadcast %81 : vector<1x32xf32> to vector<8x32xf32>
      %87 = arith.mulf %85, %86 : vector<8x32xf32>
      %c0_53 = arith.constant 0 : index
      %c0_54 = arith.constant 0 : index
      %88 = vector.load %arg5[%c0_53, %c0_54] : memref<1x32xf32, #tpu.memory_space<vmem>>, vector<1x32xf32>
      %89 = vector.broadcast %88 : vector<1x32xf32> to vector<8x32xf32>
      %90 = arith.addf %87, %89 : vector<8x32xf32>
      %91 = arith.truncf %90 : vector<8x32xf32> to vector<8x32xbf16>
      %c0_55 = arith.constant 0 : index
      %c0_56 = arith.constant 0 : index
      %92 = vector.load %arg14[%c0_55, %c0_56] : memref<8x32xbf16, #tpu.memory_space<vmem>>, vector<8x32xbf16>
      tpu.vector_store %arg14[%c0_55, %c0_56], %91 {strides = array<i32>} : memref<8x32xbf16, #tpu.memory_space<vmem>>, vector<8x32xbf16>,
      %93 = arith.mulf %80, %80 : vector<8x1xf32>
      %94 = arith.mulf %81, %81 : vector<1x32xf32>
      %95 = vector.broadcast %93 : vector<8x1xf32> to vector<8x32xf32>
      %96 = vector.broadcast %94 : vector<1x32xf32> to vector<8x32xf32>
      %97 = arith.mulf %95, %96 : vector<8x32xf32>
      %98 = arith.mulf %97, %66 : vector<8x32xf32>
      %99 = arith.truncf %98 : vector<8x32xf32> to vector<8x32xbf16>
      %c0_57 = arith.constant 0 : index
      %c0_58 = arith.constant 0 : index
      %100 = vector.load %arg15[%c0_57, %c0_58] : memref<8x32xbf16, #tpu.memory_space<vmem>>, vector<8x32xbf16>
      tpu.vector_store %arg15[%c0_57, %c0_58], %99 {strides = array<i32>} : memref<8x32xbf16, #tpu.memory_space<vmem>>, vector<8x32xbf16>,
      %c0_59 = arith.constant 0 : index
      %c0_60 = arith.constant 0 : index
      %101 = vector.load %arg10[%c0_59, %c0_60] : memref<1x32xf32, #tpu.memory_space<vmem>>, vector<1x32xf32>
      %102 = vector.broadcast %101 : vector<1x32xf32> to vector<8x32xf32>
      %103 = arith.addf %64, %102 : vector<8x32xf32>
      %c0_61 = arith.constant 0 : index
      %c0_62 = arith.constant 0 : index
      %c0_63 = arith.constant 0 : index
      %104 = vector.load %arg12[%c0_61, %c0_62, %c0_63] : memref<1x8x32xf32, #tpu.memory_space<vmem>>, vector<1x8x32xf32>
      %105 = vector.shape_cast %104 : vector<1x8x32xf32> to vector<8x32xf32>
      %106 = vector.shape_cast %103 : vector<8x32xf32> to vector<1x8x32xf32>
      tpu.vector_store %arg12[%c0_61, %c0_62, %c0_63], %106 {strides = array<i32>} : memref<1x8x32xf32, #tpu.memory_space<vmem>>, vector<1x8x32xf32>,
      %c0_64 = arith.constant 0 : index
      %c0_65 = arith.constant 0 : index
      %c0_66 = arith.constant 0 : index
      %107 = vector.load %arg13[%c0_64, %c0_65, %c0_66] : memref<1x8x32xf32, #tpu.memory_space<vmem>>, vector<1x8x32xf32>
      %108 = vector.shape_cast %107 : vector<1x8x32xf32> to vector<8x32xf32>
      %109 = vector.shape_cast %66 : vector<8x32xf32> to vector<1x8x32xf32>
      tpu.vector_store %arg13[%c0_64, %c0_65, %c0_66], %109 {strides = array<i32>} : memref<1x8x32xf32, #tpu.memory_space<vmem>>, vector<1x8x32xf32>,
    } else {
    }
    %c0 = arith.constant 0 : index
    %c0_1 = arith.constant 0 : index
    %3 = vector.load %arg14[%c0, %c0_1] : memref<8x32xbf16, #tpu.memory_space<vmem>>, vector<8x32xbf16>
    %c0_2 = arith.constant 0 : index
    %c0_3 = arith.constant 0 : index
    %4 = vector.load %arg15[%c0_2, %c0_3] : memref<8x32xbf16, #tpu.memory_space<vmem>>, vector<8x32xbf16>
    %c0_4 = arith.constant 0 : index
    %c0_5 = arith.constant 0 : index
    %5 = vector.load %arg6[%c0_4, %c0_5] : memref<128x32xbf16, #tpu.memory_space<vmem>>, vector<128x32xbf16>
    %cst = arith.constant dense<0.000000e+00> : vector<8x128xf32>
    %6 = tpu.matmul %3, %5, %cst {dimension_numbers = #tpu.dot_dimension_numbers<[1], [1], [0], [0], [0, 0, 1, 0], [], []>} : vector<8x32xbf16>, vector<128x32xbf16>, vector<8x128xf32> -> vector<8x128xf32>
    %c0_6 = arith.constant 0 : index
    %c0_7 = arith.constant 0 : index
    %7 = vector.load %arg7[%c0_6, %c0_7] : memref<1x128xf32, #tpu.memory_space<vmem>>, vector<1x128xf32>
    %8 = vector.broadcast %7 : vector<1x128xf32> to vector<8x128xf32>
    %9 = arith.addf %6, %8 : vector<8x128xf32>
    %c0_8 = arith.constant 0 : index
    %c0_9 = arith.constant 0 : index
    %10 = vector.load %arg8[%c0_8, %c0_9] : memref<128x32xbf16, #tpu.memory_space<vmem>>, vector<128x32xbf16>
    %cst_10 = arith.constant dense<0.000000e+00> : vector<8x128xf32>
    %11 = tpu.matmul %4, %10, %cst_10 {dimension_numbers = #tpu.dot_dimension_numbers<[1], [1], [0], [0], [0, 0, 1, 0], [], []>} : vector<8x32xbf16>, vector<128x32xbf16>, vector<8x128xf32> -> vector<8x128xf32>
    %12 = arith.mulf %9, %9 : vector<8x128xf32>
    %cst_11 = arith.constant 4.471500e-02 : f32
    %13 = vector.broadcast %cst_11 : f32 to vector<8x128xf32>
    %14 = arith.mulf %13, %12 : vector<8x128xf32>
    %15 = arith.mulf %14, %9 : vector<8x128xf32>
    %16 = arith.addf %9, %15 : vector<8x128xf32>
    %cst_12 = arith.constant 0.797884583 : f32
    %17 = vector.broadcast %cst_12 : f32 to vector<8x128xf32>
    %18 = arith.mulf %17, %16 : vector<8x128xf32>
    %19 = math.tanh %18 : vector<8x128xf32>
    %cst_13 = arith.constant 5.000000e-01 : f32
    %20 = vector.broadcast %cst_13 : f32 to vector<8x128xf32>
    %21 = arith.mulf %20, %9 : vector<8x128xf32>
    %cst_14 = arith.constant 1.000000e+00 : f32
    %22 = vector.broadcast %cst_14 : f32 to vector<8x128xf32>
    %23 = arith.addf %22, %19 : vector<8x128xf32>
    %24 = arith.mulf %21, %23 : vector<8x128xf32>
    %cst_15 = arith.constant 1.341450e-01 : f32
    %25 = vector.broadcast %cst_15 : f32 to vector<8x128xf32>
    %26 = arith.mulf %25, %12 : vector<8x128xf32>
    %cst_16 = arith.constant 1.000000e+00 : f32
    %27 = vector.broadcast %cst_16 : f32 to vector<8x128xf32>
    %28 = arith.addf %27, %26 : vector<8x128xf32>
    %cst_17 = arith.constant 0.797884583 : f32
    %29 = vector.broadcast %cst_17 : f32 to vector<8x128xf32>
    %30 = arith.mulf %29, %28 : vector<8x128xf32>
    %cst_18 = arith.constant 1.000000e+00 : f32
    %31 = vector.broadcast %cst_18 : f32 to vector<8x128xf32>
    %32 = arith.addf %31, %19 : vector<8x128xf32>
    %cst_19 = arith.constant 5.000000e-01 : f32
    %33 = vector.broadcast %cst_19 : f32 to vector<8x128xf32>
    %34 = arith.mulf %33, %32 : vector<8x128xf32>
    %cst_20 = arith.constant 5.000000e-01 : f32
    %35 = vector.broadcast %cst_20 : f32 to vector<8x128xf32>
    %36 = arith.mulf %35, %9 : vector<8x128xf32>
    %37 = arith.mulf %19, %19 : vector<8x128xf32>
    %cst_21 = arith.constant 1.000000e+00 : f32
    %38 = vector.broadcast %cst_21 : f32 to vector<8x128xf32>
    %39 = arith.subf %38, %37 : vector<8x128xf32>
    %40 = arith.mulf %36, %39 : vector<8x128xf32>
    %41 = arith.mulf %40, %30 : vector<8x128xf32>
    %42 = arith.addf %34, %41 : vector<8x128xf32>
    %43 = arith.mulf %42, %42 : vector<8x128xf32>
    %44 = arith.mulf %43, %11 : vector<8x128xf32>
    %c0_22 = arith.constant 0 : index
    %c0_23 = arith.constant 0 : index
    %c0_24 = arith.constant 0 : index
    %45 = vector.load %arg12[%c0_22, %c0_23, %c0_24] : memref<1x8x32xf32, #tpu.memory_space<vmem>>, vector<1x8x32xf32>
    %46 = vector.shape_cast %45 : vector<1x8x32xf32> to vector<8x32xf32>
    %47 = arith.truncf %24 : vector<8x128xf32> to vector<8x128xbf16>
    %c0_25 = arith.constant 0 : index
    %c0_26 = arith.constant 0 : index
    %48 = vector.load %arg9[%c0_25, %c0_26] : memref<32x128xbf16, #tpu.memory_space<vmem>>, vector<32x128xbf16>
    %cst_27 = arith.constant dense<0.000000e+00> : vector<8x32xf32>
    %49 = tpu.matmul %47, %48, %cst_27 {dimension_numbers = #tpu.dot_dimension_numbers<[1], [1], [0], [0], [0, 0, 1, 0], [], []>} : vector<8x128xbf16>, vector<32x128xbf16>, vector<8x32xf32> -> vector<8x32xf32>
    %50 = arith.addf %46, %49 : vector<8x32xf32>
    %c0_28 = arith.constant 0 : index
    %c0_29 = arith.constant 0 : index
    %c0_30 = arith.constant 0 : index
    %51 = vector.load %arg12[%c0_28, %c0_29, %c0_30] : memref<1x8x32xf32, #tpu.memory_space<vmem>>, vector<1x8x32xf32>
    %52 = vector.shape_cast %51 : vector<1x8x32xf32> to vector<8x32xf32>
    %53 = vector.shape_cast %50 : vector<8x32xf32> to vector<1x8x32xf32>
    tpu.vector_store %arg12[%c0_28, %c0_29, %c0_30], %53 {strides = array<i32>} : memref<1x8x32xf32, #tpu.memory_space<vmem>>, vector<1x8x32xf32>,
    %c0_31 = arith.constant 0 : index
    %c0_32 = arith.constant 0 : index
    %c0_33 = arith.constant 0 : index
    %54 = vector.load %arg13[%c0_31, %c0_32, %c0_33] : memref<1x8x32xf32, #tpu.memory_space<vmem>>, vector<1x8x32xf32>
    %55 = vector.shape_cast %54 : vector<1x8x32xf32> to vector<8x32xf32>
    %56 = arith.truncf %44 : vector<8x128xf32> to vector<8x128xbf16>
    %c0_34 = arith.constant 0 : index
    %c0_35 = arith.constant 0 : index
    %57 = vector.load %arg11[%c0_34, %c0_35] : memref<32x128xbf16, #tpu.memory_space<vmem>>, vector<32x128xbf16>
    %cst_36 = arith.constant dense<0.000000e+00> : vector<8x32xf32>
    %58 = tpu.matmul %56, %57, %cst_36 {dimension_numbers = #tpu.dot_dimension_numbers<[1], [1], [0], [0], [0, 0, 1, 0], [], []>} : vector<8x128xbf16>, vector<32x128xbf16>, vector<8x32xf32> -> vector<8x32xf32>
    %59 = arith.addf %55, %58 : vector<8x32xf32>
    %c0_37 = arith.constant 0 : index
    %c0_38 = arith.constant 0 : index
    %c0_39 = arith.constant 0 : index
    %60 = vector.load %arg13[%c0_37, %c0_38, %c0_39] : memref<1x8x32xf32, #tpu.memory_space<vmem>>, vector<1x8x32xf32>
    %61 = vector.shape_cast %60 : vector<1x8x32xf32> to vector<8x32xf32>
    %62 = vector.shape_cast %59 : vector<8x32xf32> to vector<1x8x32xf32>
    tpu.vector_store %arg13[%c0_37, %c0_38, %c0_39], %62 {strides = array<i32>} : memref<1x8x32xf32, #tpu.memory_space<vmem>>, vector<1x8x32xf32>,
    return
  }
  func.func @transform_0(%arg0: i32, %arg1: i32) -> (i32, i32, i32) {
    %c0_i32 = arith.constant 0 : i32
    %c0_i32_0 = arith.constant 0 : i32
    %c0_i32_1 = arith.constant 0 : i32
    return %arg0, %c0_i32, %c0_i32_0 : i32, i32, i32
  }
  func.func @transform_1(%arg0: i32, %arg1: i32) -> (i32, i32, i32) {
    %c0_i32 = arith.constant 0 : i32
    %c0_i32_0 = arith.constant 0 : i32
    %c0_i32_1 = arith.constant 0 : i32
    return %arg0, %c0_i32, %c0_i32_0 : i32, i32, i32
  }
  func.func @transform_2(%arg0: i32, %arg1: i32) -> (i32, i32) {
    %c0_i32 = arith.constant 0 : i32
    %c0_i32_0 = arith.constant 0 : i32
    %c0_i32_1 = arith.constant 0 : i32
    return %c0_i32, %c0_i32_0 : i32, i32
  }
  func.func @transform_3(%arg0: i32, %arg1: i32) -> (i32, i32) {
    %c0_i32 = arith.constant 0 : i32
    %c0_i32_0 = arith.constant 0 : i32
    %c0_i32_1 = arith.constant 0 : i32
    return %c0_i32, %c0_i32_0 : i32, i32
  }
  func.func @transform_4(%arg0: i32, %arg1: i32) -> (i32, i32) {
    %c0_i32 = arith.constant 0 : i32
    %c0_i32_0 = arith.constant 0 : i32
    return %arg1, %c0_i32 : i32, i32
  }
  func.func @transform_5(%arg0: i32, %arg1: i32) -> (i32, i32) {
    %c0_i32 = arith.constant 0 : i32
    %c0_i32_0 = arith.constant 0 : i32
    return %c0_i32, %arg1 : i32, i32
  }
  func.func @transform_6(%arg0: i32, %arg1: i32) -> (i32, i32) {
    %c0_i32 = arith.constant 0 : i32
    %c0_i32_0 = arith.constant 0 : i32
    return %arg1, %c0_i32 : i32, i32
  }
  func.func @transform_7(%arg0: i32, %arg1: i32) -> (i32, i32) {
    %c0_i32 = arith.constant 0 : i32
    %c0_i32_0 = arith.constant 0 : i32
    return %c0_i32, %arg1 : i32, i32
  }
  func.func @transform_8(%arg0: i32, %arg1: i32) -> (i32, i32) {
    %c0_i32 = arith.constant 0 : i32
    %c0_i32_0 = arith.constant 0 : i32
    %c0_i32_1 = arith.constant 0 : i32
    return %c0_i32, %c0_i32_0 : i32, i32
  }
  func.func @transform_9(%arg0: i32, %arg1: i32) -> (i32, i32) {
    %c0_i32 = arith.constant 0 : i32
    %c0_i32_0 = arith.constant 0 : i32
    return %c0_i32, %arg1 : i32, i32
  }
  func.func @transform_10(%arg0: i32, %arg1: i32) -> (i32, i32, i32) {
    %c0_i32 = arith.constant 0 : i32
    %c0_i32_0 = arith.constant 0 : i32
    %c0_i32_1 = arith.constant 0 : i32
    return %arg0, %c0_i32, %c0_i32_0 : i32, i32, i32
  }
  func.func @transform_11(%arg0: i32, %arg1: i32) -> (i32, i32, i32) {
    %c0_i32 = arith.constant 0 : i32
    %c0_i32_0 = arith.constant 0 : i32
    %c0_i32_1 = arith.constant 0 : i32
    return %arg0, %c0_i32, %c0_i32_0 : i32, i32, i32
  }
}

</mosaic_0001>

<llo_original>
// kernel: square.4
$region0: #{square.4}
  #allocation0 [shape = 's32[1]{0}', space=sflag, size = 0x4, scoped, tag = 'scoped memory for square.4']
  %s0 = inlined_call_operand.vmem [shape: f32[128,32], index: 0, kind: input, shape index: {}, may-alias: {0,1}]
  %s1 = inlined_call_operand.vmem [shape: f32[128,32], index: 1, kind: input, shape index: {}, may-alias: {0,1}]
  %s2 = inlined_call_operand.vmem [shape: bf16[128,32], index: 2, kind: output, shape index: {}]
  %v3 = vld [vmem:[%s0] sm:$0xff]
  %v4 = vld [vmem:[%s1] sm:$0xff]
  %5 = xla_tuple %v3, %v4
  %6 = xla_tuple %5
  %v7 = vmul.f32 %v3, %v4
  %8 = xla_tuple %v7
  %v9 = vpack.c.bf16 0.0, %v7
  %10 = vst [vmem:[%s2] sm:$0xf] %v9
  %s11 = scalar_lea.vmem %s0, 8
  %v12 = vld [vmem:[%s11] sm:$0xff]
  %s13 = scalar_lea.vmem %s1, 8
  %v14 = vld [vmem:[%s13] sm:$0xff]
  %15 = xla_tuple %v12, %v14
  %16 = xla_tuple %15
  %v17 = vmul.f32 %v12, %v14
  %18 = xla_tuple %v17
  %s19 = scalar_lea.vmem %s2, 4
  %v20 = vpack.c.bf16 0.0, %v17
  %21 = vst [vmem:[%s19] sm:$0xf] %v20
  %s22 = scalar_lea.vmem %s0, 16
  %v23 = vld [vmem:[%s22] sm:$0xff]
  %s24 = scalar_lea.vmem %s1, 16
  %v25 = vld [vmem:[%s24] sm:$0xff]
  %26 = xla_tuple %v23, %v25
  %27 = xla_tuple %26
  %v28 = vmul.f32 %v23, %v25
  %29 = xla_tuple %v28
  %s30 = scalar_lea.vmem %s2, 8
  %v31 = vpack.c.bf16 0.0, %v28
  %32 = vst [vmem:[%s30] sm:$0xf] %v31
  %s33 = scalar_lea.vmem %s0, 24
  %v34 = vld [vmem:[%s33] sm:$0xff]
  %s35 = scalar_lea.vmem %s1, 24
  %v36 = vld [vmem:[%s35] sm:$0xff]
  %37 = xla_tuple %v34, %v36
  %38 = xla_tuple %37
  %v39 = vmul.f32 %v34, %v36
  %40 = xla_tuple %v39
  %s41 = scalar_lea.vmem %s2, 12
  %v42 = vpack.c.bf16 0.0, %v39
  %43 = vst [vmem:[%s41] sm:$0xf] %v42

// kernel: suq_transformer_block.2
$region0: #{suq_transformer_block.2}
  #allocation0 [shape = 'u32[]', space=smem, size = 0x4, offset = 0x4, fixed_abs, tag = 'smem constant byte address 0x4 - core index']
  #allocation1 [shape = 'u32[144,128]{1,0:T(1,128)}', space=vmem, size = 0x12000, scoped, tag = 'internal scratch']
  #allocation2 [shape = 'bf16[8,32]{1,0:T(8,128)(2,1)}', space=vmem, size = 0x800, scoped, tag = 'scratch operand']
  #allocation3 [shape = 'bf16[8,32]{1,0:T(8,128)(2,1)}', space=vmem, size = 0x800, scoped, tag = 'scratch operand']
  %s0 = inlined_call_operand.vmem [shape: f32[2,8,32], index: 0, kind: input, shape index: {}]
  %s1 = inlined_call_operand.vmem [shape: f32[2,8,32], index: 1, kind: input, shape index: {}]
  %s2 = inlined_call_operand.vmem [shape: f32[1,32], index: 2, kind: input, shape index: {}]
  %s3 = inlined_call_operand.vmem [shape: f32[1,32], index: 3, kind: input, shape index: {}]
  %s4 = inlined_call_operand.vmem [shape: bf16[4,24,32], index: 4, kind: input, shape index: {}]
  %s5 = inlined_call_operand.vmem [shape: bf16[4,32,8], index: 5, kind: input, shape index: {}]
  %s6 = inlined_call_operand.vmem [shape: bf16[4,32,32], index: 6, kind: input, shape index: {}]
  %s7 = inlined_call_operand.vmem [shape: f32[2,8,32], index: 7, kind: output, shape index: {0}]
  %s8 = inlined_call_operand.vmem [shape: f32[2,8,32], index: 8, kind: output, shape index: {1}]
  %9 = xla_tuple %s7, %s8
  %s10 = sld [smem:[#allocation0]]
  $region73: #{suq_transformer_block.2} parent=0
    _
  %s12 = ssub.s32 1, %s10
  %s13 = scalar_select 0, %s12, %s10
  loop: start=0, step=1, limit=10
  $region2: #{suq_transformer_block.2} parent=0 // loop_pre_header
    _
  $region3: #{suq_transformer_block.2} parent=0 // loop_header
    %s15 = sphi 0, %s19
    %p16 = scmp.ge.s32.totalorder %s15, 10
    %s22 = sphi 0, %s34
    %s23 = sphi 0, %s30
    %s24 = sphi 0, %s22
    %s25 = sphi 0, %s23
    %s26 = sphi 0, %s24
    %s27 = sphi 0, %s25
    %s37 = sphi 0, %s39
    %s40 = sphi 0, %s37
    %s41 = sphi 0, %s40
    %s57 = sphi 0, %s41
    %s63 = sphi 0, %s65
    %s66 = sphi 0, %s63
    %s67 = sphi 0, %s66
    %s83 = sphi 0, %s67
    %s87 = sphi 0, %s87
    %s89 = sphi 0, %s87
    %s90 = sphi 0, %s89
    %s104 = sphi 0, %s90
    %s108 = sphi 0, %s108
    %s110 = sphi 0, %s108
    %s111 = sphi 0, %s110
    %s125 = sphi 0, %s111
    %s131 = sphi 0, %s133
    %s134 = sphi 0, %s131
    %s135 = sphi 0, %s134
    %s151 = sphi 0, %s135
    %s157 = sphi 0, %s159
    %s160 = sphi 0, %s157
    %s161 = sphi 0, %s160
    %s177 = sphi 0, %s161
    %s183 = sphi 0, %s185
    %s186 = sphi 0, %s183
    %s187 = sphi 0, %s186
    %s203 = sphi 0, %s187
    %s209 = sphi 0, %s211
    %s212 = sphi 0, %s209
    %s213 = sphi 0, %s212
    %s229 = sphi 0, %s213
    %s235 = sphi 0, %s237
    %s238 = sphi 0, %s235
    %s239 = sphi 0, %s238
    %s255 = sphi 0, %s239
  $region4: #{suq_transformer_block.2} parent=0 // loop_header_branch
    %18 = sbr.rel (%p16) target = $region8
  $region5: #{suq_transformer_block.2} parent=0 // loop_body
    %s20 = ssub.s32 %s15, 1
    %s21 = ssub.s32 %s15, 2
    %s28 = sadd.s32 1, %s23
    %p29 = scmp.ge.s32.totalorder %s28, 4
    %s30 = scalar_select %p29, 0, %s28
    %s31 = sadd.s32 1, %s22
    %s32 = scalar_select %p29, %s31, %s22
    %p33 = scmp.ge.s32.totalorder %s32, 2
    %s34 = scalar_select %p33, 0, %s32
    %s35 = ssub.s32 %s22, %s34
    %p36 = scmp.eq.s32.totalorder %s35, 0
    %s38 = sadd.s32 %s37, 1
    %s39 = scalar_select %p36, %s37, %s38
    %p42 = pneg %p36
    %p43 = scmp.eq.s32.totalorder %s15, 7
    %p44 = por %p42, %p43
    %p45 = scmp.ne.s32.totalorder %s37, %s40
    %p46 = scmp.eq.s32.totalorder %s15, 0
    %p47 = por %p45, %p46
    %p48 = scmp.ne.s32.totalorder %s37, %s40
    %p49 = scmp.eq.s32.totalorder %s20, 7
    %p50 = por %p48, %p49
    %p51 = scmp.ne.s32.totalorder %s40, %s41
    %p52 = scmp.eq.s32.totalorder %s20, 0
    %p53 = por %p51, %p52
    %p54 = scmp.ne.s32.totalorder %s40, %s41
    %p55 = scmp.eq.s32.totalorder %s21, 7
    %p56 = por %p54, %p55
    %p58 = scmp.ne.s32.totalorder %s41, %s57
    %p59 = scmp.eq.s32.totalorder %s21, 0
    %p60 = por %p58, %p59
    %s61 = ssub.s32 %s22, %s34
    %p62 = scmp.eq.s32.totalorder %s61, 0
    %s64 = sadd.s32 %s63, 1
    %s65 = scalar_select %p62, %s63, %s64
    %p68 = pneg %p62
    %p69 = scmp.eq.s32.totalorder %s15, 7
    %p70 = por %p68, %p69
    %p71 = scmp.ne.s32.totalorder %s63, %s66
    %p72 = scmp.eq.s32.totalorder %s15, 0
    %p73 = por %p71, %p72
    %p74 = scmp.ne.s32.totalorder %s63, %s66
    %p75 = scmp.eq.s32.totalorder %s20, 7
    %p76 = por %p74, %p75
    %p77 = scmp.ne.s32.totalorder %s66, %s67
    %p78 = scmp.eq.s32.totalorder %s20, 0
    %p79 = por %p77, %p78
    %p80 = scmp.ne.s32.totalorder %s66, %s67
    %p81 = scmp.eq.s32.totalorder %s21, 7
    %p82 = por %p80, %p81
    %p84 = scmp.ne.s32.totalorder %s67, %s83
    %p85 = scmp.eq.s32.totalorder %s21, 0
    %p86 = por %p84, %p85
    %s88 = sadd.s32 %s87, 1
    %p91 = scmp.eq.s32.totalorder %s15, 7
    %p92 = scmp.ne.s32.totalorder %s87, %s89
    %p93 = scmp.eq.s32.totalorder %s15, 0
    %p94 = por %p92, %p93
    %p95 = scmp.ne.s32.totalorder %s87, %s89
    %p96 = scmp.eq.s32.totalorder %s20, 7
    %p97 = por %p95, %p96
    %p98 = scmp.ne.s32.totalorder %s89, %s90
    %p99 = scmp.eq.s32.totalorder %s20, 0
    %p100 = por %p98, %p99
    %p101 = scmp.ne.s32.totalorder %s89, %s90
    %p102 = scmp.eq.s32.totalorder %s21, 7
    %p103 = por %p101, %p102
    %p105 = scmp.ne.s32.totalorder %s90, %s104
    %p106 = scmp.eq.s32.totalorder %s21, 0
    %p107 = por %p105, %p106
    %s109 = sadd.s32 %s108, 1
    %p112 = scmp.eq.s32.totalorder %s15, 7
    %p113 = scmp.ne.s32.totalorder %s108, %s110
    %p114 = scmp.eq.s32.totalorder %s15, 0
    %p115 = por %p113, %p114
    %p116 = scmp.ne.s32.totalorder %s108, %s110
    %p117 = scmp.eq.s32.totalorder %s20, 7
    %p118 = por %p116, %p117
    %p119 = scmp.ne.s32.totalorder %s110, %s111
    %p120 = scmp.eq.s32.totalorder %s20, 0
    %p121 = por %p119, %p120
    %p122 = scmp.ne.s32.totalorder %s110, %s111
    %p123 = scmp.eq.s32.totalorder %s21, 7
    %p124 = por %p122, %p123
    %p126 = scmp.ne.s32.totalorder %s111, %s125
    %p127 = scmp.eq.s32.totalorder %s21, 0
    %p128 = por %p126, %p127
    %s129 = ssub.s32 %s23, %s30
    %p130 = scmp.eq.s32.totalorder %s129, 0
    %s132 = sadd.s32 %s131, 1
    %s133 = scalar_select %p130, %s131, %s132
    %p136 = pneg %p130
    %p137 = scmp.eq.s32.totalorder %s15, 7
    %p138 = por %p136, %p137
    %p139 = scmp.ne.s32.totalorder %s131, %s134
    %p140 = scmp.eq.s32.totalorder %s15, 0
    %p141 = por %p139, %p140
    %p142 = scmp.ne.s32.totalorder %s131, %s134
    %p143 = scmp.eq.s32.totalorder %s20, 7
    %p144 = por %p142, %p143
    %p145 = scmp.ne.s32.totalorder %s134, %s135
    %p146 = scmp.eq.s32.totalorder %s20, 0
    %p147 = por %p145, %p146
    %p148 = scmp.ne.s32.totalorder %s134, %s135
    %p149 = scmp.eq.s32.totalorder %s21, 7
    %p150 = por %p148, %p149
    %p152 = scmp.ne.s32.totalorder %s135, %s151
    %p153 = scmp.eq.s32.totalorder %s21, 0
    %p154 = por %p152, %p153
    %s155 = ssub.s32 %s23, %s30
    %p156 = scmp.eq.s32.totalorder %s155, 0
    %s158 = sadd.s32 %s157, 1
    %s159 = scalar_select %p156, %s157, %s158
    %p162 = pneg %p156
    %p163 = scmp.eq.s32.totalorder %s15, 7
    %p164 = por %p162, %p163
    %p165 = scmp.ne.s32.totalorder %s157, %s160
    %p166 = scmp.eq.s32.totalorder %s15, 0
    %p167 = por %p165, %p166
    %p168 = scmp.ne.s32.totalorder %s157, %s160
    %p169 = scmp.eq.s32.totalorder %s20, 7
    %p170 = por %p168, %p169
    %p171 = scmp.ne.s32.totalorder %s160, %s161
    %p172 = scmp.eq.s32.totalorder %s20, 0
    %p173 = por %p171, %p172
    %p174 = scmp.ne.s32.totalorder %s160, %s161
    %p175 = scmp.eq.s32.totalorder %s21, 7
    %p176 = por %p174, %p175
    %p178 = scmp.ne.s32.totalorder %s161, %s177
    %p179 = scmp.eq.s32.totalorder %s21, 0
    %p180 = por %p178, %p179
    %s181 = ssub.s32 %s23, %s30
    %p182 = scmp.eq.s32.totalorder %s181, 0
    %s184 = sadd.s32 %s183, 1
    %s185 = scalar_select %p182, %s183, %s184
    %p188 = pneg %p182
    %p189 = scmp.eq.s32.totalorder %s15, 7
    %p190 = por %p188, %p189
    %p191 = scmp.ne.s32.totalorder %s183, %s186
    %p192 = scmp.eq.s32.totalorder %s15, 0
    %p193 = por %p191, %p192
    %p194 = scmp.ne.s32.totalorder %s183, %s186
    %p195 = scmp.eq.s32.totalorder %s20, 7
    %p196 = por %p194, %p195
    %p197 = scmp.ne.s32.totalorder %s186, %s187
    %p198 = scmp.eq.s32.totalorder %s20, 0
    %p199 = por %p197, %p198
    %p200 = scmp.ne.s32.totalorder %s186, %s187
    %p201 = scmp.eq.s32.totalorder %s21, 7
    %p202 = por %p200, %p201
    %p204 = scmp.ne.s32.totalorder %s187, %s203
    %p205 = scmp.eq.s32.totalorder %s21, 0
    %p206 = por %p204, %p205
    %s207 = ssub.s32 %s22, %s34
    %p208 = scmp.eq.s32.totalorder %s207, 0
    %s210 = sadd.s32 %s209, 1
    %s211 = scalar_select %p208, %s209, %s210
    %p214 = pneg %p208
    %p215 = scmp.eq.s32.totalorder %s15, 7
    %p216 = por %p214, %p215
    %p217 = scmp.ne.s32.totalorder %s209, %s212
    %p218 = scmp.eq.s32.totalorder %s15, 0
    %p219 = por %p217, %p218
    %p220 = scmp.ne.s32.totalorder %s209, %s212
    %p221 = scmp.eq.s32.totalorder %s20, 7
    %p222 = por %p220, %p221
    %p223 = scmp.ne.s32.totalorder %s212, %s213
    %p224 = scmp.eq.s32.totalorder %s20, 0
    %p225 = por %p223, %p224
    %p226 = scmp.ne.s32.totalorder %s212, %s213
    %p227 = scmp.eq.s32.totalorder %s21, 7
    %p228 = por %p226, %p227
    %p230 = scmp.ne.s32.totalorder %s213, %s229
    %p231 = scmp.eq.s32.totalorder %s21, 0
    %p232 = por %p230, %p231
    %s233 = ssub.s32 %s22, %s34
    %p234 = scmp.eq.s32.totalorder %s233, 0
    %s236 = sadd.s32 %s235, 1
    %s237 = scalar_select %p234, %s235, %s236
    %p240 = pneg %p234
    %p241 = scmp.eq.s32.totalorder %s15, 7
    %p242 = por %p240, %p241
    %p243 = scmp.ne.s32.totalorder %s235, %s238
    %p244 = scmp.eq.s32.totalorder %s15, 0
    %p245 = por %p243, %p244
    %p246 = scmp.ne.s32.totalorder %s235, %s238
    %p247 = scmp.eq.s32.totalorder %s20, 7
    %p248 = por %p246, %p247
    %p249 = scmp.ne.s32.totalorder %s238, %s239
    %p250 = scmp.eq.s32.totalorder %s20, 0
    %p251 = por %p249, %p250
    %p252 = scmp.ne.s32.totalorder %s238, %s239
    %p253 = scmp.eq.s32.totalorder %s21, 7
    %p254 = por %p252, %p253
    %p256 = scmp.ne.s32.totalorder %s239, %s255
    %p257 = scmp.eq.s32.totalorder %s21, 0
    %p258 = por %p256, %p257
    %p259 = scmp.le.s32.totalorder 1, %s15
    %p260 = scmp.lt.s32.totalorder %s15, 9
    %p261 = pnand %p259, %p260
    %p262 = pneg %p261
    // Predicated region
    $region9: #{suq_transformer_block.2} parent=5 // pred_check
      _
    $region10: #{suq_transformer_block.2} parent=5 // pred_check_branch
      %264 = sbr.rel (%p261) target = $region12
    $region11: #{suq_transformer_block.2} parent=5 // pred_region
      %s265 = ssub.s32 %s15, 1
      // Predicated region
      $region13: #{suq_transformer_block.2} parent=11 // pred_check
        %p266 = pneg %p100
      $region14: #{suq_transformer_block.2} parent=11 // pred_check_branch
        %268 = sbr.rel (%p266) target = $region16
      $region15: #{suq_transformer_block.2} parent=11 // pred_region
        _
      $region16: #{suq_transformer_block.2} parent=11 // pred_fallthru
        _
      // Predicated region
      $region17: #{suq_transformer_block.2} parent=11 // pred_check
        %p269 = pneg %p121
      $region18: #{suq_transformer_block.2} parent=11 // pred_check_branch
        %271 = sbr.rel (%p269) target = $region20
      $region19: #{suq_transformer_block.2} parent=11 // pred_region
        _
      $region20: #{suq_transformer_block.2} parent=11 // pred_fallthru
        _
    $region12: #{suq_transformer_block.2} parent=5 // pred_fallthru
      _
    %p272 = scmp.lt.s32.totalorder %s15, 8
    // Predicated region
    $region21: #{suq_transformer_block.2} parent=5 // pred_check
      %p273 = pneg %p272
    $region22: #{suq_transformer_block.2} parent=5 // pred_check_branch
      %275 = sbr.rel (%p273) target = $region24
    $region23: #{suq_transformer_block.2} parent=5 // pred_region
      // Predicated region
      $region25: #{suq_transformer_block.2} parent=23 // pred_check
        %p276 = pneg %p47
      $region26: #{suq_transformer_block.2} parent=23 // pred_check_branch
        %278 = sbr.rel (%p276) target = $region28
      $region27: #{suq_transformer_block.2} parent=23 // pred_region
        %p279 = scmp.lt.s32.totalorder %s22, 1
        %s280 = scalar_select %p279, %s22, 1
        %s281 = smul.addr %s280, 8
        %s282 = scalar_lea.vmem %s0, %s281
      $region28: #{suq_transformer_block.2} parent=23 // pred_fallthru
        _
      // Predicated region
      $region29: #{suq_transformer_block.2} parent=23 // pred_check
        %p283 = pneg %p73
      $region30: #{suq_transformer_block.2} parent=23 // pred_check_branch
        %285 = sbr.rel (%p283) target = $region32
      $region31: #{suq_transformer_block.2} parent=23 // pred_region
        %p286 = scmp.lt.s32.totalorder %s22, 1
        %s287 = scalar_select %p286, %s22, 1
        %s288 = smul.addr %s287, 8
        %s289 = scalar_lea.vmem %s1, %s288
      $region32: #{suq_transformer_block.2} parent=23 // pred_fallthru
        _
      // Predicated region
      $region33: #{suq_transformer_block.2} parent=23 // pred_check
        %p290 = pneg %p141
      $region34: #{suq_transformer_block.2} parent=23 // pred_check_branch
        %292 = sbr.rel (%p290) target = $region36
      $region35: #{suq_transformer_block.2} parent=23 // pred_region
        %p293 = scmp.lt.s32.totalorder %s23, 3
        %s294 = scalar_select %p293, %s23, 3
        %s295 = smul.addr %s294, 3
        %s296 = smul.addr %s295, 4
        %s297 = scalar_lea.vmem %s4, %s296
      $region36: #{suq_transformer_block.2} parent=23 // pred_fallthru
        _
      // Predicated region
      $region37: #{suq_transformer_block.2} parent=23 // pred_check
        %p298 = pneg %p167
      $region38: #{suq_transformer_block.2} parent=23 // pred_check_branch
        %300 = sbr.rel (%p298) target = $region40
      $region39: #{suq_transformer_block.2} parent=23 // pred_region
        %p301 = scmp.lt.s32.totalorder %s23, 3
        %s302 = scalar_select %p301, %s23, 3
        %s303 = smul.addr %s302, 4
        %s304 = smul.addr %s303, 4
        %s305 = scalar_lea.vmem %s5, %s304
      $region40: #{suq_transformer_block.2} parent=23 // pred_fallthru
        _
      // Predicated region
      $region41: #{suq_transformer_block.2} parent=23 // pred_check
        %p306 = pneg %p193
      $region42: #{suq_transformer_block.2} parent=23 // pred_check_branch
        %308 = sbr.rel (%p306) target = $region44
      $region43: #{suq_transformer_block.2} parent=23 // pred_region
        %p309 = scmp.lt.s32.totalorder %s23, 3
        %s310 = scalar_select %p309, %s23, 3
        %s311 = smul.addr %s310, 4
        %s312 = smul.addr %s311, 4
        %s313 = scalar_lea.vmem %s6, %s312
      $region44: #{suq_transformer_block.2} parent=23 // pred_fallthru
        _
    $region24: #{suq_transformer_block.2} parent=5 // pred_fallthru
      _
    %p314 = scmp.le.s32.totalorder 1, %s15
    %p315 = scmp.lt.s32.totalorder %s15, 9
    %p316 = pnand %p314, %p315
    %p317 = pneg %p316
    // Predicated region
    $region45: #{suq_transformer_block.2} parent=5 // pred_check
      _
    $region46: #{suq_transformer_block.2} parent=5 // pred_check_branch
      %319 = sbr.rel (%p316) target = $region48
    $region47: #{suq_transformer_block.2} parent=5 // pred_region
      %s320 = ssub.s32 %s15, 1
      %p321 = scmp.lt.s32.totalorder %s24, 1
      %s322 = scalar_select %p321, %s24, 1
      %s323 = smul.addr %s322, 8
      %s324 = scalar_lea.vmem %s0, %s323
      %p325 = pneg %p53
      %p326 = pneg %p50
      %p327 = scmp.lt.s32.totalorder %s24, 1
      %s328 = scalar_select %p327, %s24, 1
      %s329 = smul.addr %s328, 8
      %s330 = scalar_lea.vmem %s1, %s329
      %p331 = pneg %p79
      %p332 = pneg %p76
      %p333 = pneg %p100
      %p334 = pneg %p97
      %p335 = pneg %p121
      %p336 = pneg %p118
      %p337 = scmp.lt.s32.totalorder %s25, 3
      %s338 = scalar_select %p337, %s25, 3
      %s339 = smul.addr %s338, 3
      %s340 = smul.addr %s339, 4
      %s341 = scalar_lea.vmem %s4, %s340
      %p342 = pneg %p147
      %p343 = pneg %p144
      %p344 = scmp.lt.s32.totalorder %s25, 3
      %s345 = scalar_select %p344, %s25, 3
      %s346 = smul.addr %s345, 4
      %s347 = smul.addr %s346, 4
      %s348 = scalar_lea.vmem %s5, %s347
      %p349 = pneg %p173
      %p350 = pneg %p170
      %p351 = scmp.lt.s32.totalorder %s25, 3
      %s352 = scalar_select %p351, %s25, 3
      %s353 = smul.addr %s352, 4
      %s354 = smul.addr %s353, 4
      %s355 = scalar_lea.vmem %s6, %s354
      %p356 = pneg %p199
      %p357 = pneg %p196
      %p358 = pneg %p225
      %p359 = pneg %p222
      %p360 = scmp.lt.s32.totalorder %s24, 1
      %s361 = scalar_select %p360, %s24, 1
      %s362 = smul.addr %s361, 8
      %s363 = scalar_lea.vmem %s7, %s362
      %p364 = pneg %p251
      %p365 = pneg %p248
      %p366 = scmp.lt.s32.totalorder %s24, 1
      %s367 = scalar_select %p366, %s24, 1
      %s368 = smul.addr %s367, 8
      %s369 = scalar_lea.vmem %s8, %s368
      %p370 = scmp.lt.s32.totalorder %s24, 1
      %s371 = scalar_select %p370, %s24, 1
      %s372 = smul.addr %s371, 8
      %s373 = scalar_lea.vmem %s0, %s372
      %p374 = scmp.lt.s32.totalorder %s24, 1
      %s375 = scalar_select %p374, %s24, 1
      %s376 = smul.addr %s375, 8
      %s377 = scalar_lea.vmem %s1, %s376
      %p378 = scmp.lt.s32.totalorder %s25, 3
      %s379 = scalar_select %p378, %s25, 3
      %s380 = smul.addr %s379, 3
      %s381 = smul.addr %s380, 4
      %s382 = scalar_lea.vmem %s4, %s381
      %p383 = scmp.lt.s32.totalorder %s25, 3
      %s384 = scalar_select %p383, %s25, 3
      %s385 = smul.addr %s384, 4
      %s386 = smul.addr %s385, 4
      %s387 = scalar_lea.vmem %s5, %s386
      %p388 = scmp.lt.s32.totalorder %s25, 3
      %s389 = scalar_select %p388, %s25, 3
      %s390 = smul.addr %s389, 4
      %s391 = smul.addr %s390, 4
      %s392 = scalar_lea.vmem %s6, %s391
      %p393 = scmp.lt.s32.totalorder %s24, 1
      %s394 = scalar_select %p393, %s24, 1
      %s395 = smul.addr %s394, 8
      %s396 = scalar_lea.vmem %s7, %s395
      %p397 = scmp.lt.s32.totalorder %s24, 1
      %s398 = scalar_select %p397, %s24, 1
      %s399 = smul.addr %s398, 8
      %s400 = scalar_lea.vmem %s8, %s399
      %p402 = scmp.eq.s32.totalorder %s25, 0
      // Predicated region
      $region49: #{suq_transformer_block.2} parent=47 // pred_check
        %p403 = pneg %p402
      $region50: #{suq_transformer_block.2} parent=47 // pred_check_branch
        %405 = sbr.rel (%p403) target = $region52
      $region51: #{suq_transformer_block.2} parent=47 // pred_region
        %v406 = vld [vmem:[%s373] sm:$0xff]
        %v407 = vld [vmem:[%s377] sm:$0xff]
        %vm408 = vcmask 261120
        %v409 = vsel %vm408, %v406, 0.0
        %410 = vadd.xlane.f32.xlu0 %v409
        %v411 = vpop.xlane.xlu0 %410
        %v412 = vrcp.pop 32.0
        %v413 = vmul.f32 %v411, %v412
        %v414 = vsub.f32 %v406, %v413
        %v415 = vmul.f32 %v414, %v414
        %v416 = vsel %vm408, %v415, 0.0
        %417 = vadd.xlane.f32.xlu0 %v416
        %v418 = vpop.xlane.xlu0 %417
        %v419 = vmul.f32 %v418, %v412
        %v420 = vadd.f32 %v419, 1e-05
        %v421 = vrsqrt.pop %v420
        %v422 = vld [vmem:[%s2] sm:$0x1]
        %v423 = vmul.f32 %v414, %v421
        %v425 = vlaneseq
        %v426 = vshrl.u32 %v425, 7
        %v427 = vsub.s32 0, %v426
        %v428 = vrot.slane %v422, %v427
        %v430 = vmul.f32 %v423, %v428
        %v431 = vld [vmem:[%s3] sm:$0x1]
        %v433 = vlaneseq
        %v434 = vshrl.u32 %v433, 7
        %v435 = vsub.s32 0, %v434
        %v436 = vrot.slane %v431, %v435
        %v438 = vadd.f32 %v430, %v436
        %v439 = vpack.c.bf16 %v438, %v438
        %vm440 = vcmask 257024
        %441 = vst.msk [vmem:[#allocation2] sm:$0xf] %vm440, %v439
        %v442 = vmul.f32 %v421, %v421
        %v443 = vmul.f32 %v422, %v422
        %v445 = vlaneseq
        %v446 = vshrl.u32 %v445, 7
        %v447 = vsub.s32 0, %v446
        %v448 = vrot.slane %v443, %v447
        %v450 = vmul.f32 %v442, %v448
        %v451 = vmul.f32 %v450, %v407
        %v452 = vpack.c.bf16 %v451, %v451
        %453 = vst.msk [vmem:[#allocation3] sm:$0xf] %vm440, %v452
        %454 = vst.msk [vmem:[%s396] sm:$0xff] %vm408, %v406
        %455 = vst.msk [vmem:[%s400] sm:$0xff] %vm408, %v407
      $region52: #{suq_transformer_block.2} parent=47 // pred_fallthru
        _
      %v456 = vld [vmem:[#allocation2] sm:$0xf]
      %v457 = vld [vmem:[#allocation3] sm:$0xf]
      %v458 = vld [vmem:[%s382] sm:$0xf]
      %v459 = vld [vmem:[%s382 + $0x4] sm:$0xf]
      %v460 = vld [vmem:[%s382 + $0x8] sm:$0xf]
      %v464 = vunpack.c.l.b16 %v458
      %v465 = vunpack.c.l.b16 %v459
      %v466 = vunpack.c.l.b16 %v460
      %v467 = vpack.c.b16 %v465, %v464
      %v468 = vpack.c.b16 %v466, %v466
      %vm469 = vcmask 261120
      %v471 = vsel %vm469, %v456, 0
      %v474 = vsel %vm469, %v467, 0
      %v477 = vsel %vm469, %v468, 0
      %479 = vmatprep.subr.bf16.mxu0 0
      %480 = vmatpush1.bf16.xpose.msra.mxu0 0
      %481 = vmatprep.subr.bf16.mxu0 0
      %482 = vmatpush1.bf16.xpose.msra.mxu0 0
      %483 = vmatprep.subr.bf16.mxu0 0
      %484 = vmatpush1.bf16.xpose.msra.mxu0 0
      %485 = vmatprep.subr.bf16.mxu0 0
      %486 = vmatpush1.bf16.xpose.msra.mxu0 0
      %487 = vmatprep.subr.bf16.mxu0 0
      %488 = vmatpush1.bf16.xpose.msra.mxu0 0
      %489 = vmatprep.subr.bf16.mxu0 0
      %490 = vmatpush1.bf16.xpose.msra.mxu0 0
      %491 = vmatprep.subr.bf16.mxu0 0
      %492 = vmatpush1.bf16.xpose.msra.mxu0 %v477
      %493 = vmatprep.subr.bf16.mxu0 0
      %494 = vmatpush1.bf16.xpose.msra.mxu0 %v474
      %495 = vmatprep.subr.bf16.mxu0 0
      %496 = vmatpush2.bf16.xpose.msra.mxu0 0
      %497 = vmatprep.subr.bf16.mxu0 0
      %498 = vmatpush2.bf16.xpose.msra.mxu0 0
      %499 = vmatprep.subr.bf16.mxu0 0
      %500 = vmatpush2.bf16.xpose.msra.mxu0 0
      %501 = vmatprep.subr.bf16.mxu0 0
      %502 = vmatpush2.bf16.xpose.msra.mxu0 0
      %503 = vmatprep.subr.bf16.mxu0 0
      %504 = vmatpush2.bf16.xpose.msra.mxu0 0
      %505 = vmatprep.subr.bf16.mxu0 0
      %506 = vmatpush2.bf16.xpose.msra.mxu0 0
      %507 = vmatprep.subr.bf16.mxu0 0
      %508 = vmatpush2.bf16.xpose.msra.mxu0 0
      %509 = vmatprep.subr.bf16.mxu0 0
      %510 = vmatpush2.bf16.xpose.msra.mxu0 0
      %511 = vmatprep.mubr.bf16.mxu0 0
      %512 = vmatmul.mubr.bf16.gmra.mxu0 %v471
      %v513 = vpop.f32.mrf.mxu0
      %v514 = vadd.f32 0.0, %v513
      %v515 = vpop.f32.mrf.mxu0
      %v516 = vpop.f32.mrf.mxu0
      %v517 = vpop.f32.mrf.mxu0
      %518 = vdwg.mxu0
      %v519 = vpack.c.bf16 %v514, %v514
      %521 = vrot.lane.b32.xlu0 %v519, 120
      %v522 = vpop.permute.xlu0 %521
      %vm523 = vcmask 64512
      %v525 = vsel %vm523, %v519, 0
      %v528 = vsel %vm523, %v522, 0
      %530 = vmatprep.subr.bf16.mxu0 0
      %531 = vmatpush1.bf16.xpose.msra.mxu0 0
      %532 = vmatprep.subr.bf16.mxu0 0
      %533 = vmatpush1.bf16.xpose.msra.mxu0 0
      %534 = vmatprep.subr.bf16.mxu0 0
      %535 = vmatpush1.bf16.xpose.msra.mxu0 0
      %536 = vmatprep.subr.bf16.mxu0 0
      %537 = vmatpush1.bf16.xpose.msra.mxu0 0
      %538 = vmatprep.subr.bf16.mxu0 0
      %539 = vmatpush1.bf16.xpose.msra.mxu0 0
      %540 = vmatprep.subr.bf16.mxu0 0
      %541 = vmatpush1.bf16.xpose.msra.mxu0 0
      %542 = vmatprep.subr.bf16.mxu0 0
      %543 = vmatpush1.bf16.xpose.msra.mxu0 0
      %544 = vmatprep.subr.bf16.mxu0 0
      %545 = vmatpush1.bf16.xpose.msra.mxu0 %v528
      %546 = vmatprep.subr.bf16.mxu0 0
      %547 = vmatpush2.bf16.xpose.msra.mxu0 0
      %548 = vmatprep.subr.bf16.mxu0 0
      %549 = vmatpush2.bf16.xpose.msra.mxu0 0
      %550 = vmatprep.subr.bf16.mxu0 0
      %551 = vmatpush2.bf16.xpose.msra.mxu0 0
      %552 = vmatprep.subr.bf16.mxu0 0
      %553 = vmatpush2.bf16.xpose.msra.mxu0 0
      %554 = vmatprep.subr.bf16.mxu0 0
      %555 = vmatpush2.bf16.xpose.msra.mxu0 0
      %556 = vmatprep.subr.bf16.mxu0 0
      %557 = vmatpush2.bf16.xpose.msra.mxu0 0
      %558 = vmatprep.subr.bf16.mxu0 0
      %559 = vmatpush2.bf16.xpose.msra.mxu0 0
      %560 = vmatprep.subr.bf16.mxu0 0
      %561 = vmatpush2.bf16.xpose.msra.mxu0 0
      %562 = vmatprep.mubr.bf16.mxu0 0
      %563 = vmatmul.mubr.bf16.gmra.mxu0 %v525
      %v564 = vpop.f32.mrf.mxu0
      %v565 = vadd.f32 0.0, %v564
      %v566 = vpop.f32.mrf.mxu0
      %v567 = vpop.f32.mrf.mxu0
      %v568 = vpop.f32.mrf.mxu0
      %569 = vdwg.mxu0
      %v570 = vlaneseq
      %v571 = vshrl.u32 %v570, 7
      %v572 = vlaneseq
      %v573 = vand.u32 %v572, 127
      %vm574 = vcmp.le.s32.totalorder %v573, %v571
      %v575 = vsel %vm574, %v565, -1e+30
      %v576 = vsel %vm523, %v575, -inf
      %577 = vmax.xlane.f32.xlu0 %v576
      %v578 = vpop.xlane.xlu0 %577
      %v579 = vsub.f32 %v575, %v578
      %v580 = vmul.f32 %v579, 1.442695
      %v581 = vpow.pop %v580
      %v582 = vsel %vm523, %v581, 0.0
      %583 = vadd.xlane.f32.xlu0 %v582
      %v584 = vpop.xlane.xlu0 %583
      %v585 = vrcp.pop %v584
      %v586 = vmul.f32 %v584, %v584
      %v587 = vrcp.pop %v586
      %v588 = vpack.c.bf16 %v581, %v581
      %v589 = vmul.bf16 %v588, %v588
      %590 = vrot.lane.b32.xlu0 %v519, 112
      %v591 = vpop.permute.xlu0 %590
      %v593 = vsel %vm523, %v588, 0
      %vm595 = vcmask 1043456
      %v597 = vsel %vm595, %v591, 0
      %599 = vmatprep.subr.bf16.mxu0 0
      %600 = vmatpush1.bf16.msra.mxu0 0
      %601 = vmatprep.subr.bf16.mxu0 0
      %602 = vmatpush1.bf16.msra.mxu0 0
      %603 = vmatprep.subr.bf16.mxu0 0
      %604 = vmatpush1.bf16.msra.mxu0 0
      %605 = vmatprep.subr.bf16.mxu0 0
      %606 = vmatpush1.bf16.msra.mxu0 0
      %607 = vmatprep.subr.bf16.mxu0 0
      %608 = vmatpush1.bf16.msra.mxu0 0
      %609 = vmatprep.subr.bf16.mxu0 0
      %610 = vmatpush1.bf16.msra.mxu0 0
      %611 = vmatprep.subr.bf16.mxu0 0
      %612 = vmatpush1.bf16.msra.mxu0 0
      %613 = vmatprep.subr.bf16.mxu0 0
      %614 = vmatpush1.bf16.msra.mxu0 %v597
      %615 = vmatprep.subr.bf16.mxu0 0
      %616 = vmatpush2.bf16.msra.mxu0 0
      %617 = vmatprep.subr.bf16.mxu0 0
      %618 = vmatpush2.bf16.msra.mxu0 0
      %619 = vmatprep.subr.bf16.mxu0 0
      %620 = vmatpush2.bf16.msra.mxu0 0
      %621 = vmatprep.subr.bf16.mxu0 0
      %622 = vmatpush2.bf16.msra.mxu0 0
      %623 = vmatprep.subr.bf16.mxu0 0
      %624 = vmatpush2.bf16.msra.mxu0 0
      %625 = vmatprep.subr.bf16.mxu0 0
      %626 = vmatpush2.bf16.msra.mxu0 0
      %627 = vmatprep.subr.bf16.mxu0 0
      %628 = vmatpush2.bf16.msra.mxu0 0
      %629 = vmatprep.subr.bf16.mxu0 0
      %630 = vmatpush2.bf16.msra.mxu0 0
      %631 = vmatprep.mubr.bf16.mxu0 0
      %632 = vmatmul.mubr.bf16.gmra.mxu0 %v593
      %v633 = vpop.f32.mrf.mxu0
      %v634 = vadd.f32 0.0, %v633
      %v635 = vpop.f32.mrf.mxu0
      %v636 = vpop.f32.mrf.mxu0
      %v637 = vpop.f32.mrf.mxu0
      %638 = vdwg.mxu0
      %v639 = vmul.f32 %v634, %v585
      %v640 = vpack.c.bf16 %v639, %v639
      %v641 = vld [vmem:[%s396] sm:$0xff]
      %v642 = vld [vmem:[%s387] sm:$0xf]
      %v643 = vld [vmem:[%s387 + $0x4] sm:$0xf]
      %v644 = vld [vmem:[%s387 + $0x8] sm:$0xf]
      %v645 = vld [vmem:[%s387 + $0xc] sm:$0xf]
      %v650 = vunpack.c.l.b16 %v642
      %v651 = vunpack.c.l.b16 %v643
      %v652 = vunpack.c.l.b16 %v644
      %v653 = vunpack.c.l.b16 %v645
      %v654 = vpack.c.b16 %v651, %v650
      %v655 = vpack.c.b16 %v653, %v652
      %v657 = vsel %vm523, %v640, 0
      %v660 = vsel %vm523, %v654, 0
      %v663 = vsel %vm523, %v655, 0
      %665 = vmatprep.subr.bf16.mxu0 0
      %666 = vmatpush1.bf16.xpose.msra.mxu0 0
      %667 = vmatprep.subr.bf16.mxu0 0
      %668 = vmatpush1.bf16.xpose.msra.mxu0 0
      %669 = vmatprep.subr.bf16.mxu0 0
      %670 = vmatpush1.bf16.xpose.msra.mxu0 0
      %671 = vmatprep.subr.bf16.mxu0 0
      %672 = vmatpush1.bf16.xpose.msra.mxu0 0
      %673 = vmatprep.subr.bf16.mxu0 0
      %674 = vmatpush1.bf16.xpose.msra.mxu0 0
      %675 = vmatprep.subr.bf16.mxu0 0
      %676 = vmatpush1.bf16.xpose.msra.mxu0 0
      %677 = vmatprep.subr.bf16.mxu0 0
      %678 = vmatpush1.bf16.xpose.msra.mxu0 %v663
      %679 = vmatprep.subr.bf16.mxu0 0
      %680 = vmatpush1.bf16.xpose.msra.mxu0 %v660
      %681 = vmatprep.subr.bf16.mxu0 0
      %682 = vmatpush2.bf16.xpose.msra.mxu0 0
      %683 = vmatprep.subr.bf16.mxu0 0
      %684 = vmatpush2.bf16.xpose.msra.mxu0 0
      %685 = vmatprep.subr.bf16.mxu0 0
      %686 = vmatpush2.bf16.xpose.msra.mxu0 0
      %687 = vmatprep.subr.bf16.mxu0 0
      %688 = vmatpush2.bf16.xpose.msra.mxu0 0
      %689 = vmatprep.subr.bf16.mxu0 0
      %690 = vmatpush2.bf16.xpose.msra.mxu0 0
      %691 = vmatprep.subr.bf16.mxu0 0
      %692 = vmatpush2.bf16.xpose.msra.mxu0 0
      %693 = vmatprep.subr.bf16.mxu0 0
      %694 = vmatpush2.bf16.xpose.msra.mxu0 0
      %695 = vmatprep.subr.bf16.mxu0 0
      %696 = vmatpush2.bf16.xpose.msra.mxu0 0
      %697 = vmatprep.mubr.bf16.mxu0 0
      %698 = vmatmul.mubr.bf16.gmra.mxu0 %v657
      %v699 = vpop.f32.mrf.mxu0
      %v700 = vadd.f32 0.0, %v699
      %v701 = vpop.f32.mrf.mxu0
      %v702 = vpop.f32.mrf.mxu0
      %v703 = vpop.f32.mrf.mxu0
      %704 = vdwg.mxu0
      %v705 = vadd.f32 %v641, %v700
      %706 = vst.msk [vmem:[%s396] sm:$0xff] %vm469, %v705
      %v707 = vld [vmem:[%s392] sm:$0xf]
      %v708 = vld [vmem:[%s392 + $0x4] sm:$0xf]
      %v709 = vld [vmem:[%s392 + $0x8] sm:$0xf]
      %v710 = vld [vmem:[%s392 + $0xc] sm:$0xf]
      %v715 = vunpack.c.l.b16 %v707
      %v716 = vunpack.c.l.b16 %v708
      %v717 = vunpack.c.l.b16 %v709
      %v718 = vunpack.c.l.b16 %v710
      %v719 = vpack.c.b16 %v716, %v715
      %v720 = vpack.c.b16 %v718, %v717
      %v722 = vsel %vm469, %v457, 0
      %v725 = vsel %vm469, %v719, 0
      %v728 = vsel %vm469, %v720, 0
      %730 = vmatprep.subr.bf16.mxu0 0
      %731 = vmatpush1.bf16.xpose.msra.mxu0 0
      %732 = vmatprep.subr.bf16.mxu0 0
      %733 = vmatpush1.bf16.xpose.msra.mxu0 0
      %734 = vmatprep.subr.bf16.mxu0 0
      %735 = vmatpush1.bf16.xpose.msra.mxu0 0
      %736 = vmatprep.subr.bf16.mxu0 0
      %737 = vmatpush1.bf16.xpose.msra.mxu0 0
      %738 = vmatprep.subr.bf16.mxu0 0
      %739 = vmatpush1.bf16.xpose.msra.mxu0 0
      %740 = vmatprep.subr.bf16.mxu0 0
      %741 = vmatpush1.bf16.xpose.msra.mxu0 0
      %742 = vmatprep.subr.bf16.mxu0 0
      %743 = vmatpush1.bf16.xpose.msra.mxu0 %v728
      %744 = vmatprep.subr.bf16.mxu0 0
      %745 = vmatpush1.bf16.xpose.msra.mxu0 %v725
      %746 = vmatprep.subr.bf16.mxu0 0
      %747 = vmatpush2.bf16.xpose.msra.mxu0 0
      %748 = vmatprep.subr.bf16.mxu0 0
      %749 = vmatpush2.bf16.xpose.msra.mxu0 0
      %750 = vmatprep.subr.bf16.mxu0 0
      %751 = vmatpush2.bf16.xpose.msra.mxu0 0
      %752 = vmatprep.subr.bf16.mxu0 0
      %753 = vmatpush2.bf16.xpose.msra.mxu0 0
      %754 = vmatprep.subr.bf16.mxu0 0
      %755 = vmatpush2.bf16.xpose.msra.mxu0 0
      %756 = vmatprep.subr.bf16.mxu0 0
      %757 = vmatpush2.bf16.xpose.msra.mxu0 0
      %758 = vmatprep.subr.bf16.mxu0 0
      %759 = vmatpush2.bf16.xpose.msra.mxu0 0
      %760 = vmatprep.subr.bf16.mxu0 0
      %761 = vmatpush2.bf16.xpose.msra.mxu0 0
      %762 = vmatprep.mubr.bf16.mxu0 0
      %763 = vmatmul.mubr.bf16.gmra.mxu0 %v722
      %v764 = vpop.f32.mrf.mxu0
      %v765 = vadd.f32 0.0, %v764
      %v766 = vpop.f32.mrf.mxu0
      %v767 = vpop.f32.mrf.mxu0
      %v768 = vpop.f32.mrf.mxu0
      %769 = vdwg.mxu0
      %v770 = vpack.c.bf16 %v765, %v765
      %v771 = vld [vmem:[%s400] sm:$0xff]
      %v773 = vsel %vm523, %v589, 0
      %v776 = vsel %vm595, %v770, 0
      %778 = vmatprep.subr.bf16.mxu0 0
      %779 = vmatpush1.bf16.msra.mxu0 0
      %780 = vmatprep.subr.bf16.mxu0 0
      %781 = vmatpush1.bf16.msra.mxu0 0
      %782 = vmatprep.subr.bf16.mxu0 0
      %783 = vmatpush1.bf16.msra.mxu0 0
      %784 = vmatprep.subr.bf16.mxu0 0
      %785 = vmatpush1.bf16.msra.mxu0 0
      %786 = vmatprep.subr.bf16.mxu0 0
      %787 = vmatpush1.bf16.msra.mxu0 0
      %788 = vmatprep.subr.bf16.mxu0 0
      %789 = vmatpush1.bf16.msra.mxu0 0
      %790 = vmatprep.subr.bf16.mxu0 0
      %791 = vmatpush1.bf16.msra.mxu0 0
      %792 = vmatprep.subr.bf16.mxu0 0
      %793 = vmatpush1.bf16.msra.mxu0 %v776
      %794 = vmatprep.subr.bf16.mxu0 0
      %795 = vmatpush2.bf16.msra.mxu0 0
      %796 = vmatprep.subr.bf16.mxu0 0
      %797 = vmatpush2.bf16.msra.mxu0 0
      %798 = vmatprep.subr.bf16.mxu0 0
      %799 = vmatpush2.bf16.msra.mxu0 0
      %800 = vmatprep.subr.bf16.mxu0 0
      %801 = vmatpush2.bf16.msra.mxu0 0
      %802 = vmatprep.subr.bf16.mxu0 0
      %803 = vmatpush2.bf16.msra.mxu0 0
      %804 = vmatprep.subr.bf16.mxu0 0
      %805 = vmatpush2.bf16.msra.mxu0 0
      %806 = vmatprep.subr.bf16.mxu0 0
      %807 = vmatpush2.bf16.msra.mxu0 0
      %808 = vmatprep.subr.bf16.mxu0 0
      %809 = vmatpush2.bf16.msra.mxu0 0
      %810 = vmatprep.mubr.bf16.mxu0 0
      %811 = vmatmul.mubr.bf16.gmra.mxu0 %v773
      %v812 = vpop.f32.mrf.mxu0
      %v813 = vadd.f32 0.0, %v812
      %v814 = vpop.f32.mrf.mxu0
      %v815 = vpop.f32.mrf.mxu0
      %v816 = vpop.f32.mrf.mxu0
      %817 = vdwg.mxu0
      %v818 = vmul.f32 %v813, %v587
      %v819 = vadd.f32 %v771, %v818
      %820 = vst.msk [vmem:[%s400] sm:$0xff] %vm469, %v819
      %p821 = scmp.lt.s32.totalorder %s24, 1
      %s822 = scalar_select %p821, %s24, 1
      %s823 = smul.addr %s822, 8
      %s824 = scalar_lea.vmem %s7, %s823
      %p825 = scmp.lt.s32.totalorder %s24, 1
      %s826 = scalar_select %p825, %s24, 1
      %s827 = smul.addr %s826, 8
      %s828 = scalar_lea.vmem %s8, %s827
      // Predicated region
      $region53: #{suq_transformer_block.2} parent=47 // pred_check
        %p829 = pneg %p222
      $region54: #{suq_transformer_block.2} parent=47 // pred_check_branch
        %831 = sbr.rel (%p829) target = $region56
      $region55: #{suq_transformer_block.2} parent=47 // pred_region
        _
      $region56: #{suq_transformer_block.2} parent=47 // pred_fallthru
        _
      // Predicated region
      $region57: #{suq_transformer_block.2} parent=47 // pred_check
        %p832 = pneg %p248
      $region58: #{suq_transformer_block.2} parent=47 // pred_check_branch
        %834 = sbr.rel (%p832) target = $region60
      $region59: #{suq_transformer_block.2} parent=47 // pred_region
        _
      $region60: #{suq_transformer_block.2} parent=47 // pred_fallthru
        _
    $region48: #{suq_transformer_block.2} parent=5 // pred_fallthru
      _
    %p835 = scmp.le.s32.totalorder 2, %s15
    // Predicated region
    $region61: #{suq_transformer_block.2} parent=5 // pred_check
      %p836 = pneg %p835
    $region62: #{suq_transformer_block.2} parent=5 // pred_check_branch
      %838 = sbr.rel (%p836) target = $region64
    $region63: #{suq_transformer_block.2} parent=5 // pred_region
      %s839 = ssub.s32 %s15, 2
      // Predicated region
      $region65: #{suq_transformer_block.2} parent=63 // pred_check
        %p840 = pneg %p228
      $region66: #{suq_transformer_block.2} parent=63 // pred_check_branch
        %842 = sbr.rel (%p840) target = $region68
      $region67: #{suq_transformer_block.2} parent=63 // pred_region
        %p843 = scmp.lt.s32.totalorder %s26, 1
        %s844 = scalar_select %p843, %s26, 1
        %s845 = smul.addr %s844, 8
        %s846 = scalar_lea.vmem %s7, %s845
      $region68: #{suq_transformer_block.2} parent=63 // pred_fallthru
        _
      // Predicated region
      $region69: #{suq_transformer_block.2} parent=63 // pred_check
        %p847 = pneg %p254
      $region70: #{suq_transformer_block.2} parent=63 // pred_check_branch
        %849 = sbr.rel (%p847) target = $region72
      $region71: #{suq_transformer_block.2} parent=63 // pred_region
        %p850 = scmp.lt.s32.totalorder %s26, 1
        %s851 = scalar_select %p850, %s26, 1
        %s852 = smul.addr %s851, 8
        %s853 = scalar_lea.vmem %s8, %s852
      $region72: #{suq_transformer_block.2} parent=63 // pred_fallthru
        _
    $region64: #{suq_transformer_block.2} parent=5 // pred_fallthru
      _
  $region6: #{suq_transformer_block.2} parent=0 // loop_footer
    %s19 = sadd.s32 1, %s15
  $region7: #{suq_transformer_block.2} parent=0 // loop_footer_branch
    %14 = sbr.rel target = $region3
  $region8: #{suq_transformer_block.2} parent=0 // loop_exit
    _

// kernel: suq_transformer_block.3
$region0: #{suq_transformer_block.3}
  #allocation0 [shape = 'u32[]', space=smem, size = 0x4, offset = 0x4, fixed_abs, tag = 'smem constant byte address 0x4 - core index']
  #allocation1 [shape = 'u32[144,128]{1,0:T(1,128)}', space=vmem, size = 0x12000, scoped, tag = 'internal scratch']
  #allocation2 [shape = 'bf16[8,32]{1,0:T(8,128)(2,1)}', space=vmem, size = 0x800, scoped, tag = 'scratch operand']
  #allocation3 [shape = 'bf16[8,32]{1,0:T(8,128)(2,1)}', space=vmem, size = 0x800, scoped, tag = 'scratch operand']
  %s0 = inlined_call_operand.vmem [shape: f32[2,8,32], index: 0, kind: input, shape index: {}]
  %s1 = inlined_call_operand.vmem [shape: f32[2,8,32], index: 1, kind: input, shape index: {}]
  %s2 = inlined_call_operand.vmem [shape: f32[1,32], index: 2, kind: input, shape index: {}]
  %s3 = inlined_call_operand.vmem [shape: f32[1,32], index: 3, kind: input, shape index: {}]
  %s4 = inlined_call_operand.vmem [shape: bf16[128,32], index: 4, kind: input, shape index: {}]
  %s5 = inlined_call_operand.vmem [shape: f32[1,128], index: 5, kind: input, shape index: {}]
  %s6 = inlined_call_operand.vmem [shape: bf16[128,32], index: 6, kind: input, shape index: {}]
  %s7 = inlined_call_operand.vmem [shape: bf16[32,128], index: 7, kind: input, shape index: {}]
  %s8 = inlined_call_operand.vmem [shape: f32[1,32], index: 8, kind: input, shape index: {}]
  %s9 = inlined_call_operand.vmem [shape: bf16[32,128], index: 9, kind: input, shape index: {}]
  %s10 = inlined_call_operand.hbm [shape: f32[2,8,32], index: 10, kind: output, shape index: {0}]
  %s11 = inlined_call_operand.hbm [shape: f32[2,8,32], index: 11, kind: output, shape index: {1}]
  %12 = xla_tuple %s10, %s11
  %s13 = sld [smem:[#allocation0]]
  $region85: #{suq_transformer_block.3} parent=0
    _
  %s15 = ssub.s32 1, %s13
  %s16 = scalar_select 0, %s15, %s13
  $region1: #{suq_transformer_block.3} parent=0
    #allocation4 [shape = 'u8[8192]{0}', space=vmem, size = 0x2000, scoped, tag = 'output window, operand 0']
    #allocation5 [shape = 's32[2]{0}', space=sflag, size = 0x8, scoped, tag = 'scoped memory for suq_transformer_block.3']
    #allocation6 [shape = 'u8[8192]{0}', space=vmem, size = 0x2000, scoped, tag = 'output window, operand 1']
    #allocation7 [shape = 's32[2]{0}', space=sflag, size = 0x8, scoped, tag = 'scoped memory for suq_transformer_block.3']
    %17 = vsyncpa [#allocation5], 0
    %s18 = scalar_lea.sflag [#allocation5], 1
    %19 = vsyncpa %s18, 0
    %20 = vsyncpa [#allocation7], 0
    %s21 = scalar_lea.sflag [#allocation7], 1
    %22 = vsyncpa %s21, 0
    loop: start=0, step=1, limit=4
    $region2: #{suq_transformer_block.3} parent=1 // loop_pre_header
      _
    $region3: #{suq_transformer_block.3} parent=1 // loop_header
      %s24 = sphi 0, %s28
      %p25 = scmp.ge.s32.totalorder %s24, 4
      %s31 = sphi 0, %s43
      %s32 = sphi 0, %s39
      %s33 = sphi 0, %s31
      %s34 = sphi 0, %s32
      %s35 = sphi 0, %s33
      %s36 = sphi 0, %s34
      %s46 = sphi 0, %s48
      %s49 = sphi 0, %s46
      %s50 = sphi 0, %s49
      %s66 = sphi 0, %s50
      %s72 = sphi 0, %s74
      %s75 = sphi 0, %s72
      %s76 = sphi 0, %s75
      %s92 = sphi 0, %s76
      %s96 = sphi 0, %s96
      %s98 = sphi 0, %s96
      %s99 = sphi 0, %s98
      %s113 = sphi 0, %s99
      %s117 = sphi 0, %s117
      %s119 = sphi 0, %s117
      %s120 = sphi 0, %s119
      %s134 = sphi 0, %s120
      %s140 = sphi 0, %s142
      %s143 = sphi 0, %s140
      %s144 = sphi 0, %s143
      %s160 = sphi 0, %s144
      %s166 = sphi 0, %s168
      %s169 = sphi 0, %s166
      %s170 = sphi 0, %s169
      %s186 = sphi 0, %s170
      %s192 = sphi 0, %s194
      %s195 = sphi 0, %s192
      %s196 = sphi 0, %s195
      %s212 = sphi 0, %s196
      %s218 = sphi 0, %s220
      %s221 = sphi 0, %s218
      %s222 = sphi 0, %s221
      %s238 = sphi 0, %s222
      %s242 = sphi 0, %s242
      %s244 = sphi 0, %s242
      %s245 = sphi 0, %s244
      %s259 = sphi 0, %s245
      %s265 = sphi 0, %s267
      %s268 = sphi 0, %s265
      %s269 = sphi 0, %s268
      %s285 = sphi 0, %s269
      %s291 = sphi 0, %s293
      %s294 = sphi 0, %s291
      %s295 = sphi 0, %s294
      %s311 = sphi 0, %s295
      %s317 = sphi 0, %s319
      %s320 = sphi 0, %s317
      %s321 = sphi 0, %s320
      %s337 = sphi 0, %s321
    $region4: #{suq_transformer_block.3} parent=1 // loop_header_branch
      %27 = sbr.rel (%p25) target = $region8
    $region5: #{suq_transformer_block.3} parent=1 // loop_body
      %s29 = ssub.s32 %s24, 1
      %s30 = ssub.s32 %s24, 2
      %s37 = sadd.s32 1, %s32
      %p38 = scmp.ge.s32.totalorder %s37, 1
      %s39 = scalar_select %p38, 0, %s37
      %s40 = sadd.s32 1, %s31
      %s41 = scalar_select %p38, %s40, %s31
      %p42 = scmp.ge.s32.totalorder %s41, 2
      %s43 = scalar_select %p42, 0, %s41
      %s44 = ssub.s32 %s31, %s43
      %p45 = scmp.eq.s32.totalorder %s44, 0
      %s47 = sadd.s32 %s46, 1
      %s48 = scalar_select %p45, %s46, %s47
      %p51 = pneg %p45
      %p52 = scmp.eq.s32.totalorder %s24, 1
      %p53 = por %p51, %p52
      %p54 = scmp.ne.s32.totalorder %s46, %s49
      %p55 = scmp.eq.s32.totalorder %s24, 0
      %p56 = por %p54, %p55
      %p57 = scmp.ne.s32.totalorder %s46, %s49
      %p58 = scmp.eq.s32.totalorder %s29, 1
      %p59 = por %p57, %p58
      %p60 = scmp.ne.s32.totalorder %s49, %s50
      %p61 = scmp.eq.s32.totalorder %s29, 0
      %p62 = por %p60, %p61
      %p63 = scmp.ne.s32.totalorder %s49, %s50
      %p64 = scmp.eq.s32.totalorder %s30, 1
      %p65 = por %p63, %p64
      %p67 = scmp.ne.s32.totalorder %s50, %s66
      %p68 = scmp.eq.s32.totalorder %s30, 0
      %p69 = por %p67, %p68
      %s70 = ssub.s32 %s31, %s43
      %p71 = scmp.eq.s32.totalorder %s70, 0
      %s73 = sadd.s32 %s72, 1
      %s74 = scalar_select %p71, %s72, %s73
      %p77 = pneg %p71
      %p78 = scmp.eq.s32.totalorder %s24, 1
      %p79 = por %p77, %p78
      %p80 = scmp.ne.s32.totalorder %s72, %s75
      %p81 = scmp.eq.s32.totalorder %s24, 0
      %p82 = por %p80, %p81
      %p83 = scmp.ne.s32.totalorder %s72, %s75
      %p84 = scmp.eq.s32.totalorder %s29, 1
      %p85 = por %p83, %p84
      %p86 = scmp.ne.s32.totalorder %s75, %s76
      %p87 = scmp.eq.s32.totalorder %s29, 0
      %p88 = por %p86, %p87
      %p89 = scmp.ne.s32.totalorder %s75, %s76
      %p90 = scmp.eq.s32.totalorder %s30, 1
      %p91 = por %p89, %p90
      %p93 = scmp.ne.s32.totalorder %s76, %s92
      %p94 = scmp.eq.s32.totalorder %s30, 0
      %p95 = por %p93, %p94
      %s97 = sadd.s32 %s96, 1
      %p100 = scmp.eq.s32.totalorder %s24, 1
      %p101 = scmp.ne.s32.totalorder %s96, %s98
      %p102 = scmp.eq.s32.totalorder %s24, 0
      %p103 = por %p101, %p102
      %p104 = scmp.ne.s32.totalorder %s96, %s98
      %p105 = scmp.eq.s32.totalorder %s29, 1
      %p106 = por %p104, %p105
      %p107 = scmp.ne.s32.totalorder %s98, %s99
      %p108 = scmp.eq.s32.totalorder %s29, 0
      %p109 = por %p107, %p108
      %p110 = scmp.ne.s32.totalorder %s98, %s99
      %p111 = scmp.eq.s32.totalorder %s30, 1
      %p112 = por %p110, %p111
      %p114 = scmp.ne.s32.totalorder %s99, %s113
      %p115 = scmp.eq.s32.totalorder %s30, 0
      %p116 = por %p114, %p115
      %s118 = sadd.s32 %s117, 1
      %p121 = scmp.eq.s32.totalorder %s24, 1
      %p122 = scmp.ne.s32.totalorder %s117, %s119
      %p123 = scmp.eq.s32.totalorder %s24, 0
      %p124 = por %p122, %p123
      %p125 = scmp.ne.s32.totalorder %s117, %s119
      %p126 = scmp.eq.s32.totalorder %s29, 1
      %p127 = por %p125, %p126
      %p128 = scmp.ne.s32.totalorder %s119, %s120
      %p129 = scmp.eq.s32.totalorder %s29, 0
      %p130 = por %p128, %p129
      %p131 = scmp.ne.s32.totalorder %s119, %s120
      %p132 = scmp.eq.s32.totalorder %s30, 1
      %p133 = por %p131, %p132
      %p135 = scmp.ne.s32.totalorder %s120, %s134
      %p136 = scmp.eq.s32.totalorder %s30, 0
      %p137 = por %p135, %p136
      %s138 = ssub.s32 %s32, %s39
      %p139 = scmp.eq.s32.totalorder %s138, 0
      %s141 = sadd.s32 %s140, 1
      %s142 = scalar_select %p139, %s140, %s141
      %p145 = pneg %p139
      %p146 = scmp.eq.s32.totalorder %s24, 1
      %p147 = por %p145, %p146
      %p148 = scmp.ne.s32.totalorder %s140, %s143
      %p149 = scmp.eq.s32.totalorder %s24, 0
      %p150 = por %p148, %p149
      %p151 = scmp.ne.s32.totalorder %s140, %s143
      %p152 = scmp.eq.s32.totalorder %s29, 1
      %p153 = por %p151, %p152
      %p154 = scmp.ne.s32.totalorder %s143, %s144
      %p155 = scmp.eq.s32.totalorder %s29, 0
      %p156 = por %p154, %p155
      %p157 = scmp.ne.s32.totalorder %s143, %s144
      %p158 = scmp.eq.s32.totalorder %s30, 1
      %p159 = por %p157, %p158
      %p161 = scmp.ne.s32.totalorder %s144, %s160
      %p162 = scmp.eq.s32.totalorder %s30, 0
      %p163 = por %p161, %p162
      %s164 = ssub.s32 %s32, %s39
      %p165 = scmp.eq.s32.totalorder %s164, 0
      %s167 = sadd.s32 %s166, 1
      %s168 = scalar_select %p165, %s166, %s167
      %p171 = pneg %p165
      %p172 = scmp.eq.s32.totalorder %s24, 1
      %p173 = por %p171, %p172
      %p174 = scmp.ne.s32.totalorder %s166, %s169
      %p175 = scmp.eq.s32.totalorder %s24, 0
      %p176 = por %p174, %p175
      %p177 = scmp.ne.s32.totalorder %s166, %s169
      %p178 = scmp.eq.s32.totalorder %s29, 1
      %p179 = por %p177, %p178
      %p180 = scmp.ne.s32.totalorder %s169, %s170
      %p181 = scmp.eq.s32.totalorder %s29, 0
      %p182 = por %p180, %p181
      %p183 = scmp.ne.s32.totalorder %s169, %s170
      %p184 = scmp.eq.s32.totalorder %s30, 1
      %p185 = por %p183, %p184
      %p187 = scmp.ne.s32.totalorder %s170, %s186
      %p188 = scmp.eq.s32.totalorder %s30, 0
      %p189 = por %p187, %p188
      %s190 = ssub.s32 %s32, %s39
      %p191 = scmp.eq.s32.totalorder %s190, 0
      %s193 = sadd.s32 %s192, 1
      %s194 = scalar_select %p191, %s192, %s193
      %p197 = pneg %p191
      %p198 = scmp.eq.s32.totalorder %s24, 1
      %p199 = por %p197, %p198
      %p200 = scmp.ne.s32.totalorder %s192, %s195
      %p201 = scmp.eq.s32.totalorder %s24, 0
      %p202 = por %p200, %p201
      %p203 = scmp.ne.s32.totalorder %s192, %s195
      %p204 = scmp.eq.s32.totalorder %s29, 1
      %p205 = por %p203, %p204
      %p206 = scmp.ne.s32.totalorder %s195, %s196
      %p207 = scmp.eq.s32.totalorder %s29, 0
      %p208 = por %p206, %p207
      %p209 = scmp.ne.s32.totalorder %s195, %s196
      %p210 = scmp.eq.s32.totalorder %s30, 1
      %p211 = por %p209, %p210
      %p213 = scmp.ne.s32.totalorder %s196, %s212
      %p214 = scmp.eq.s32.totalorder %s30, 0
      %p215 = por %p213, %p214
      %s216 = ssub.s32 %s32, %s39
      %p217 = scmp.eq.s32.totalorder %s216, 0
      %s219 = sadd.s32 %s218, 1
      %s220 = scalar_select %p217, %s218, %s219
      %p223 = pneg %p217
      %p224 = scmp.eq.s32.totalorder %s24, 1
      %p225 = por %p223, %p224
      %p226 = scmp.ne.s32.totalorder %s218, %s221
      %p227 = scmp.eq.s32.totalorder %s24, 0
      %p228 = por %p226, %p227
      %p229 = scmp.ne.s32.totalorder %s218, %s221
      %p230 = scmp.eq.s32.totalorder %s29, 1
      %p231 = por %p229, %p230
      %p232 = scmp.ne.s32.totalorder %s221, %s222
      %p233 = scmp.eq.s32.totalorder %s29, 0
      %p234 = por %p232, %p233
      %p235 = scmp.ne.s32.totalorder %s221, %s222
      %p236 = scmp.eq.s32.totalorder %s30, 1
      %p237 = por %p235, %p236
      %p239 = scmp.ne.s32.totalorder %s222, %s238
      %p240 = scmp.eq.s32.totalorder %s30, 0
      %p241 = por %p239, %p240
      %s243 = sadd.s32 %s242, 1
      %p246 = scmp.eq.s32.totalorder %s24, 1
      %p247 = scmp.ne.s32.totalorder %s242, %s244
      %p248 = scmp.eq.s32.totalorder %s24, 0
      %p249 = por %p247, %p248
      %p250 = scmp.ne.s32.totalorder %s242, %s244
      %p251 = scmp.eq.s32.totalorder %s29, 1
      %p252 = por %p250, %p251
      %p253 = scmp.ne.s32.totalorder %s244, %s245
      %p254 = scmp.eq.s32.totalorder %s29, 0
      %p255 = por %p253, %p254
      %p256 = scmp.ne.s32.totalorder %s244, %s245
      %p257 = scmp.eq.s32.totalorder %s30, 1
      %p258 = por %p256, %p257
      %p260 = scmp.ne.s32.totalorder %s245, %s259
      %p261 = scmp.eq.s32.totalorder %s30, 0
      %p262 = por %p260, %p261
      %s263 = ssub.s32 %s32, %s39
      %p264 = scmp.eq.s32.totalorder %s263, 0
      %s266 = sadd.s32 %s265, 1
      %s267 = scalar_select %p264, %s265, %s266
      %p270 = pneg %p264
      %p271 = scmp.eq.s32.totalorder %s24, 1
      %p272 = por %p270, %p271
      %p273 = scmp.ne.s32.totalorder %s265, %s268
      %p274 = scmp.eq.s32.totalorder %s24, 0
      %p275 = por %p273, %p274
      %p276 = scmp.ne.s32.totalorder %s265, %s268
      %p277 = scmp.eq.s32.totalorder %s29, 1
      %p278 = por %p276, %p277
      %p279 = scmp.ne.s32.totalorder %s268, %s269
      %p280 = scmp.eq.s32.totalorder %s29, 0
      %p281 = por %p279, %p280
      %p282 = scmp.ne.s32.totalorder %s268, %s269
      %p283 = scmp.eq.s32.totalorder %s30, 1
      %p284 = por %p282, %p283
      %p286 = scmp.ne.s32.totalorder %s269, %s285
      %p287 = scmp.eq.s32.totalorder %s30, 0
      %p288 = por %p286, %p287
      %s289 = ssub.s32 %s31, %s43
      %p290 = scmp.eq.s32.totalorder %s289, 0
      %s292 = sadd.s32 %s291, 1
      %s293 = scalar_select %p290, %s291, %s292
      %p296 = pneg %p290
      %p297 = scmp.eq.s32.totalorder %s24, 1
      %p298 = por %p296, %p297
      %p299 = scmp.ne.s32.totalorder %s291, %s294
      %p300 = scmp.eq.s32.totalorder %s24, 0
      %p301 = por %p299, %p300
      %p302 = scmp.ne.s32.totalorder %s291, %s294
      %p303 = scmp.eq.s32.totalorder %s29, 1
      %p304 = por %p302, %p303
      %p305 = scmp.ne.s32.totalorder %s294, %s295
      %p306 = scmp.eq.s32.totalorder %s29, 0
      %p307 = por %p305, %p306
      %p308 = scmp.ne.s32.totalorder %s294, %s295
      %p309 = scmp.eq.s32.totalorder %s30, 1
      %p310 = por %p308, %p309
      %p312 = scmp.ne.s32.totalorder %s295, %s311
      %p313 = scmp.eq.s32.totalorder %s30, 0
      %p314 = por %p312, %p313
      %s315 = ssub.s32 %s31, %s43
      %p316 = scmp.eq.s32.totalorder %s315, 0
      %s318 = sadd.s32 %s317, 1
      %s319 = scalar_select %p316, %s317, %s318
      %p322 = pneg %p316
      %p323 = scmp.eq.s32.totalorder %s24, 1
      %p324 = por %p322, %p323
      %p325 = scmp.ne.s32.totalorder %s317, %s320
      %p326 = scmp.eq.s32.totalorder %s24, 0
      %p327 = por %p325, %p326
      %p328 = scmp.ne.s32.totalorder %s317, %s320
      %p329 = scmp.eq.s32.totalorder %s29, 1
      %p330 = por %p328, %p329
      %p331 = scmp.ne.s32.totalorder %s320, %s321
      %p332 = scmp.eq.s32.totalorder %s29, 0
      %p333 = por %p331, %p332
      %p334 = scmp.ne.s32.totalorder %s320, %s321
      %p335 = scmp.eq.s32.totalorder %s30, 1
      %p336 = por %p334, %p335
      %p338 = scmp.ne.s32.totalorder %s321, %s337
      %p339 = scmp.eq.s32.totalorder %s30, 0
      %p340 = por %p338, %p339
      %p341 = scmp.le.s32.totalorder 1, %s24
      %p342 = scmp.lt.s32.totalorder %s24, 3
      %p343 = pnand %p341, %p342
      %p344 = pneg %p343
      // Predicated region
      $region9: #{suq_transformer_block.3} parent=5 // pred_check
        _
      $region10: #{suq_transformer_block.3} parent=5 // pred_check_branch
        %346 = sbr.rel (%p343) target = $region12
      $region11: #{suq_transformer_block.3} parent=5 // pred_region
        %s347 = ssub.s32 %s24, 1
        // Predicated region
        $region13: #{suq_transformer_block.3} parent=11 // pred_check
          %p348 = pneg %p109
        $region14: #{suq_transformer_block.3} parent=11 // pred_check_branch
          %350 = sbr.rel (%p348) target = $region16
        $region15: #{suq_transformer_block.3} parent=11 // pred_region
          _
        $region16: #{suq_transformer_block.3} parent=11 // pred_fallthru
          _
        // Predicated region
        $region17: #{suq_transformer_block.3} parent=11 // pred_check
          %p351 = pneg %p130
        $region18: #{suq_transformer_block.3} parent=11 // pred_check_branch
          %353 = sbr.rel (%p351) target = $region20
        $region19: #{suq_transformer_block.3} parent=11 // pred_region
          _
        $region20: #{suq_transformer_block.3} parent=11 // pred_fallthru
          _
        // Predicated region
        $region21: #{suq_transformer_block.3} parent=11 // pred_check
          %p354 = pneg %p156
        $region22: #{suq_transformer_block.3} parent=11 // pred_check_branch
          %356 = sbr.rel (%p354) target = $region24
        $region23: #{suq_transformer_block.3} parent=11 // pred_region
          %s357 = smul.u32 16, %s34
          %p358 = scmp.lt.s32.totalorder %s357, 15
          %s359 = scalar_select %p358, %s357, 15
          %s360 = smul.addr %s359, 4
          %s361 = scalar_lea.vmem %s4, %s360
          %s362 = smul.u32 16, %s34
        $region24: #{suq_transformer_block.3} parent=11 // pred_fallthru
          _
        // Predicated region
        $region25: #{suq_transformer_block.3} parent=11 // pred_check
          %p363 = pneg %p182
        $region26: #{suq_transformer_block.3} parent=11 // pred_check_branch
          %365 = sbr.rel (%p363) target = $region28
        $region27: #{suq_transformer_block.3} parent=11 // pred_region
          %p366 = scmp.lt.s32.totalorder %s34, 0
          %s367 = scalar_select %p366, %s34, 0
          %s368 = scalar_lea.vmem %s5, %s367
        $region28: #{suq_transformer_block.3} parent=11 // pred_fallthru
          _
        // Predicated region
        $region29: #{suq_transformer_block.3} parent=11 // pred_check
          %p369 = pneg %p208
        $region30: #{suq_transformer_block.3} parent=11 // pred_check_branch
          %371 = sbr.rel (%p369) target = $region32
        $region31: #{suq_transformer_block.3} parent=11 // pred_region
          %s372 = smul.u32 16, %s34
          %p373 = scmp.lt.s32.totalorder %s372, 15
          %s374 = scalar_select %p373, %s372, 15
          %s375 = smul.addr %s374, 4
          %s376 = scalar_lea.vmem %s6, %s375
          %s377 = smul.u32 16, %s34
        $region32: #{suq_transformer_block.3} parent=11 // pred_fallthru
          _
        // Predicated region
        $region33: #{suq_transformer_block.3} parent=11 // pred_check
          %p378 = pneg %p234
        $region34: #{suq_transformer_block.3} parent=11 // pred_check_branch
          %380 = sbr.rel (%p378) target = $region36
        $region35: #{suq_transformer_block.3} parent=11 // pred_region
          %p381 = scmp.lt.s32.totalorder %s34, 0
          %s382 = scalar_select %p381, %s34, 0
          %s383 = smul.addr %s382, 4
          %s384 = scalar_lea.vmem %s7, %s383
        $region36: #{suq_transformer_block.3} parent=11 // pred_fallthru
          _
        // Predicated region
        $region37: #{suq_transformer_block.3} parent=11 // pred_check
          %p385 = pneg %p255
        $region38: #{suq_transformer_block.3} parent=11 // pred_check_branch
          %387 = sbr.rel (%p385) target = $region40
        $region39: #{suq_transformer_block.3} parent=11 // pred_region
          _
        $region40: #{suq_transformer_block.3} parent=11 // pred_fallthru
          _
        // Predicated region
        $region41: #{suq_transformer_block.3} parent=11 // pred_check
          %p388 = pneg %p281
        $region42: #{suq_transformer_block.3} parent=11 // pred_check_branch
          %390 = sbr.rel (%p388) target = $region44
        $region43: #{suq_transformer_block.3} parent=11 // pred_region
          %p391 = scmp.lt.s32.totalorder %s34, 0
          %s392 = scalar_select %p391, %s34, 0
          %s393 = smul.addr %s392, 4
          %s394 = scalar_lea.vmem %s9, %s393
        $region44: #{suq_transformer_block.3} parent=11 // pred_fallthru
          _
      $region12: #{suq_transformer_block.3} parent=5 // pred_fallthru
        _
      %p395 = scmp.lt.s32.totalorder %s24, 2
      // Predicated region
      $region45: #{suq_transformer_block.3} parent=5 // pred_check
        %p396 = pneg %p395
      $region46: #{suq_transformer_block.3} parent=5 // pred_check_branch
        %398 = sbr.rel (%p396) target = $region48
      $region47: #{suq_transformer_block.3} parent=5 // pred_region
        // Predicated region
        $region49: #{suq_transformer_block.3} parent=47 // pred_check
          %p399 = pneg %p56
        $region50: #{suq_transformer_block.3} parent=47 // pred_check_branch
          %401 = sbr.rel (%p399) target = $region52
        $region51: #{suq_transformer_block.3} parent=47 // pred_region
          %p402 = scmp.lt.s32.totalorder %s31, 1
          %s403 = scalar_select %p402, %s31, 1
          %s404 = smul.addr %s403, 8
          %s405 = scalar_lea.vmem %s0, %s404
        $region52: #{suq_transformer_block.3} parent=47 // pred_fallthru
          _
        // Predicated region
        $region53: #{suq_transformer_block.3} parent=47 // pred_check
          %p406 = pneg %p82
        $region54: #{suq_transformer_block.3} parent=47 // pred_check_branch
          %408 = sbr.rel (%p406) target = $region56
        $region55: #{suq_transformer_block.3} parent=47 // pred_region
          %p409 = scmp.lt.s32.totalorder %s31, 1
          %s410 = scalar_select %p409, %s31, 1
          %s411 = smul.addr %s410, 8
          %s412 = scalar_lea.vmem %s1, %s411
        $region56: #{suq_transformer_block.3} parent=47 // pred_fallthru
          _
      $region48: #{suq_transformer_block.3} parent=5 // pred_fallthru
        _
      %p413 = scmp.le.s32.totalorder 1, %s24
      %p414 = scmp.lt.s32.totalorder %s24, 3
      %p415 = pnand %p413, %p414
      %p416 = pneg %p415
      // Predicated region
      $region57: #{suq_transformer_block.3} parent=5 // pred_check
        _
      $region58: #{suq_transformer_block.3} parent=5 // pred_check_branch
        %418 = sbr.rel (%p415) target = $region60
      $region59: #{suq_transformer_block.3} parent=5 // pred_region
        %s419 = ssub.s32 %s24, 1
        %p420 = scmp.lt.s32.totalorder %s33, 1
        %s421 = scalar_select %p420, %s33, 1
        %s422 = smul.addr %s421, 8
        %s423 = scalar_lea.vmem %s0, %s422
        %p424 = pneg %p62
        %p425 = pneg %p59
        %p426 = scmp.lt.s32.totalorder %s33, 1
        %s427 = scalar_select %p426, %s33, 1
        %s428 = smul.addr %s427, 8
        %s429 = scalar_lea.vmem %s1, %s428
        %p430 = pneg %p88
        %p431 = pneg %p85
        %p432 = pneg %p109
        %p433 = pneg %p106
        %p434 = pneg %p130
        %p435 = pneg %p127
        %s436 = smul.u32 16, %s34
        %p437 = scmp.lt.s32.totalorder %s436, 15
        %s438 = scalar_select %p437, %s436, 15
        %s439 = smul.addr %s438, 4
        %s440 = scalar_lea.vmem %s4, %s439
        %p441 = pneg %p156
        %p442 = pneg %p153
        %p443 = scmp.lt.s32.totalorder %s34, 0
        %s444 = scalar_select %p443, %s34, 0
        %s445 = scalar_lea.vmem %s5, %s444
        %p446 = pneg %p182
        %p447 = pneg %p179
        %s448 = smul.u32 16, %s34
        %p449 = scmp.lt.s32.totalorder %s448, 15
        %s450 = scalar_select %p449, %s448, 15
        %s451 = smul.addr %s450, 4
        %s452 = scalar_lea.vmem %s6, %s451
        %p453 = pneg %p208
        %p454 = pneg %p205
        %p455 = scmp.lt.s32.totalorder %s34, 0
        %s456 = scalar_select %p455, %s34, 0
        %s457 = smul.addr %s456, 4
        %s458 = scalar_lea.vmem %s7, %s457
        %p459 = pneg %p234
        %p460 = pneg %p231
        %p461 = pneg %p255
        %p462 = pneg %p252
        %p463 = scmp.lt.s32.totalorder %s34, 0
        %s464 = scalar_select %p463, %s34, 0
        %s465 = smul.addr %s464, 4
        %s466 = scalar_lea.vmem %s9, %s465
        %p467 = pneg %p281
        %p468 = pneg %p278
        %p469 = pneg %p307
        %p470 = pneg %p304
        %s471 = sand.u32 %s294, 1
        %s472 = scalar_lea.sflag [#allocation5], %s471
        %s473 = sand.u32 %s294, 1
        %s474 = smul.addr %s473, 8
        %s475 = scalar_lea.vmem [#allocation4], %s474
        %p476 = pneg %p333
        %p477 = pneg %p330
        %s478 = sand.u32 %s320, 1
        %s479 = scalar_lea.sflag [#allocation7], %s478
        %s480 = sand.u32 %s320, 1
        %s481 = smul.addr %s480, 8
        %s482 = scalar_lea.vmem [#allocation6], %s481
        %p483 = scmp.lt.s32.totalorder %s33, 1
        %s484 = scalar_select %p483, %s33, 1
        %s485 = smul.addr %s484, 8
        %s486 = scalar_lea.vmem %s0, %s485
        %p487 = scmp.lt.s32.totalorder %s33, 1
        %s488 = scalar_select %p487, %s33, 1
        %s489 = smul.addr %s488, 8
        %s490 = scalar_lea.vmem %s1, %s489
        %s491 = smul.u32 16, %s34
        %p492 = scmp.lt.s32.totalorder %s491, 15
        %s493 = scalar_select %p492, %s491, 15
        %s494 = smul.addr %s493, 4
        %s495 = scalar_lea.vmem %s4, %s494
        %s496 = smul.u32 16, %s34
        %p497 = scmp.lt.s32.totalorder %s34, 0
        %s498 = scalar_select %p497, %s34, 0
        %s499 = scalar_lea.vmem %s5, %s498
        %s500 = smul.u32 16, %s34
        %p501 = scmp.lt.s32.totalorder %s500, 15
        %s502 = scalar_select %p501, %s500, 15
        %s503 = smul.addr %s502, 4
        %s504 = scalar_lea.vmem %s6, %s503
        %s505 = smul.u32 16, %s34
        %p506 = scmp.lt.s32.totalorder %s34, 0
        %s507 = scalar_select %p506, %s34, 0
        %s508 = smul.addr %s507, 4
        %s509 = scalar_lea.vmem %s7, %s508
        %p510 = scmp.lt.s32.totalorder %s34, 0
        %s511 = scalar_select %p510, %s34, 0
        %s512 = smul.addr %s511, 4
        %s513 = scalar_lea.vmem %s9, %s512
        %p515 = scmp.eq.s32.totalorder %s34, 0
        // Predicated region
        $region61: #{suq_transformer_block.3} parent=59 // pred_check
          %p516 = pneg %p515
        $region62: #{suq_transformer_block.3} parent=59 // pred_check_branch
          %518 = sbr.rel (%p516) target = $region64
        $region63: #{suq_transformer_block.3} parent=59 // pred_region
          %v519 = vld [vmem:[%s486] sm:$0xff]
          %v520 = vld [vmem:[%s490] sm:$0xff]
          %vm521 = vcmask 261120
          %v522 = vsel %vm521, %v519, 0.0
          %523 = vadd.xlane.f32.xlu0 %v522
          %v524 = vpop.xlane.xlu0 %523
          %v525 = vrcp.pop 32.0
          %v526 = vmul.f32 %v524, %v525
          %v527 = vsub.f32 %v519, %v526
          %v528 = vmul.f32 %v527, %v527
          %v529 = vsel %vm521, %v528, 0.0
          %530 = vadd.xlane.f32.xlu0 %v529
          %v531 = vpop.xlane.xlu0 %530
          %v532 = vmul.f32 %v531, %v525
          %v533 = vadd.f32 %v532, 1e-05
          %v534 = vrsqrt.pop %v533
          %v535 = vld [vmem:[%s2] sm:$0x1]
          %v536 = vmul.f32 %v527, %v534
          %v538 = vlaneseq
          %v539 = vshrl.u32 %v538, 7
          %v540 = vsub.s32 0, %v539
          %v541 = vrot.slane %v535, %v540
          %v543 = vmul.f32 %v536, %v541
          %v544 = vld [vmem:[%s3] sm:$0x1]
          %v546 = vlaneseq
          %v547 = vshrl.u32 %v546, 7
          %v548 = vsub.s32 0, %v547
          %v549 = vrot.slane %v544, %v548
          %v551 = vadd.f32 %v543, %v549
          %v552 = vpack.c.bf16 %v551, %v551
          %vm553 = vcmask 257024
          %554 = vst.msk [vmem:[#allocation2] sm:$0xf] %vm553, %v552
          %v555 = vmul.f32 %v534, %v534
          %v556 = vmul.f32 %v535, %v535
          %v558 = vlaneseq
          %v559 = vshrl.u32 %v558, 7
          %v560 = vsub.s32 0, %v559
          %v561 = vrot.slane %v556, %v560
          %v563 = vmul.f32 %v555, %v561
          %v564 = vmul.f32 %v563, %v520
          %v565 = vpack.c.bf16 %v564, %v564
          %566 = vst.msk [vmem:[#allocation3] sm:$0xf] %vm553, %v565
          %v567 = vld [vmem:[%s8] sm:$0x1]
          %v569 = vlaneseq
          %v570 = vshrl.u32 %v569, 7
          %v571 = vsub.s32 0, %v570
          %v572 = vrot.slane %v567, %v571
          %v574 = vadd.f32 %v519, %v572
          %575 = vst.msk [vmem:[%s475] sm:$0xff] %vm521, %v574
          %576 = vst.msk [vmem:[%s482] sm:$0xff] %vm521, %v520
        $region64: #{suq_transformer_block.3} parent=59 // pred_fallthru
          _
        %v577 = vld [vmem:[#allocation2] sm:$0xf]
        %v578 = vld [vmem:[#allocation3] sm:$0xf]
        %v579 = vld [vmem:[%s495] sm:$0xf]
        %v580 = vld [vmem:[%s495 + $0x4] sm:$0xf]
        %v581 = vld [vmem:[%s495 + $0x8] sm:$0xf]
        %v582 = vld [vmem:[%s495 + $0xc] sm:$0xf]
        %v583 = vld [vmem:[%s495 + $0x10] sm:$0xf]
        %v584 = vld [vmem:[%s495 + $0x14] sm:$0xf]
        %v585 = vld [vmem:[%s495 + $0x18] sm:$0xf]
        %v586 = vld [vmem:[%s495 + $0x1c] sm:$0xf]
        %v587 = vld [vmem:[%s495 + $0x20] sm:$0xf]
        %v588 = vld [vmem:[%s495 + $0x24] sm:$0xf]
        %v589 = vld [vmem:[%s495 + $0x28] sm:$0xf]
        %v590 = vld [vmem:[%s495 + $0x2c] sm:$0xf]
        %v591 = vld [vmem:[%s495 + $0x30] sm:$0xf]
        %v592 = vld [vmem:[%s495 + $0x34] sm:$0xf]
        %v593 = vld [vmem:[%s495 + $0x38] sm:$0xf]
        %v594 = vld [vmem:[%s495 + $0x3c] sm:$0xf]
        %v595 = vld [vmem:[%s499] sm:$0x1]
        %v597 = vlaneseq
        %v598 = vshrl.u32 %v597, 7
        %v599 = vsub.s32 0, %v598
        %v600 = vrot.slane %v595, %v599
        %v618 = vunpack.c.l.b16 %v579
        %v619 = vunpack.c.l.b16 %v580
        %v620 = vunpack.c.l.b16 %v581
        %v621 = vunpack.c.l.b16 %v582
        %v622 = vunpack.c.l.b16 %v583
        %v623 = vunpack.c.l.b16 %v584
        %v624 = vunpack.c.l.b16 %v585
        %v625 = vunpack.c.l.b16 %v586
        %v626 = vunpack.c.l.b16 %v587
        %v627 = vunpack.c.l.b16 %v588
        %v628 = vunpack.c.l.b16 %v589
        %v629 = vunpack.c.l.b16 %v590
        %v630 = vunpack.c.l.b16 %v591
        %v631 = vunpack.c.l.b16 %v592
        %v632 = vunpack.c.l.b16 %v593
        %v633 = vunpack.c.l.b16 %v594
        %v634 = vpack.c.b16 %v619, %v618
        %v635 = vpack.c.b16 %v621, %v620
        %v636 = vpack.c.b16 %v623, %v622
        %v637 = vpack.c.b16 %v625, %v624
        %v638 = vpack.c.b16 %v627, %v626
        %v639 = vpack.c.b16 %v629, %v628
        %v640 = vpack.c.b16 %v631, %v630
        %v641 = vpack.c.b16 %v633, %v632
        %vm642 = vcmask 261120
        %v644 = vsel %vm642, %v577, 0
        %v647 = vsel %vm642, %v634, 0
        %v650 = vsel %vm642, %v635, 0
        %v653 = vsel %vm642, %v636, 0
        %v656 = vsel %vm642, %v637, 0
        %v659 = vsel %vm642, %v638, 0
        %v662 = vsel %vm642, %v639, 0
        %v665 = vsel %vm642, %v640, 0
        %v668 = vsel %vm642, %v641, 0
        %670 = vmatprep.subr.bf16.mxu0 0
        %671 = vmatpush1.bf16.xpose.msra.mxu0 %v668
        %672 = vmatprep.subr.bf16.mxu0 0
        %673 = vmatpush1.bf16.xpose.msra.mxu0 %v665
        %674 = vmatprep.subr.bf16.mxu0 0
        %675 = vmatpush1.bf16.xpose.msra.mxu0 %v662
        %676 = vmatprep.subr.bf16.mxu0 0
        %677 = vmatpush1.bf16.xpose.msra.mxu0 %v659
        %678 = vmatprep.subr.bf16.mxu0 0
        %679 = vmatpush1.bf16.xpose.msra.mxu0 %v656
        %680 = vmatprep.subr.bf16.mxu0 0
        %681 = vmatpush1.bf16.xpose.msra.mxu0 %v653
        %682 = vmatprep.subr.bf16.mxu0 0
        %683 = vmatpush1.bf16.xpose.msra.mxu0 %v650
        %684 = vmatprep.subr.bf16.mxu0 0
        %685 = vmatpush1.bf16.xpose.msra.mxu0 %v647
        %686 = vmatprep.subr.bf16.mxu0 0
        %687 = vmatpush2.bf16.xpose.msra.mxu0 0
        %688 = vmatprep.subr.bf16.mxu0 0
        %689 = vmatpush2.bf16.xpose.msra.mxu0 0
        %690 = vmatprep.subr.bf16.mxu0 0
        %691 = vmatpush2.bf16.xpose.msra.mxu0 0
        %692 = vmatprep.subr.bf16.mxu0 0
        %693 = vmatpush2.bf16.xpose.msra.mxu0 0
        %694 = vmatprep.subr.bf16.mxu0 0
        %695 = vmatpush2.bf16.xpose.msra.mxu0 0
        %696 = vmatprep.subr.bf16.mxu0 0
        %697 = vmatpush2.bf16.xpose.msra.mxu0 0
        %698 = vmatprep.subr.bf16.mxu0 0
        %699 = vmatpush2.bf16.xpose.msra.mxu0 0
        %700 = vmatprep.subr.bf16.mxu0 0
        %701 = vmatpush2.bf16.xpose.msra.mxu0 0
        %702 = vmatprep.mubr.bf16.mxu0 0
        %703 = vmatmul.mubr.bf16.gmra.mxu0 %v644
        %v704 = vpop.f32.mrf.mxu0
        %v705 = vadd.f32 %v600, %v704
        %v706 = vpop.f32.mrf.mxu0
        %v707 = vpop.f32.mrf.mxu0
        %v708 = vpop.f32.mrf.mxu0
        %709 = vdwg.mxu0
        %v710 = vld [vmem:[%s504] sm:$0xf]
        %v711 = vld [vmem:[%s504 + $0x4] sm:$0xf]
        %v712 = vld [vmem:[%s504 + $0x8] sm:$0xf]
        %v713 = vld [vmem:[%s504 + $0xc] sm:$0xf]
        %v714 = vld [vmem:[%s504 + $0x10] sm:$0xf]
        %v715 = vld [vmem:[%s504 + $0x14] sm:$0xf]
        %v716 = vld [vmem:[%s504 + $0x18] sm:$0xf]
        %v717 = vld [vmem:[%s504 + $0x1c] sm:$0xf]
        %v718 = vld [vmem:[%s504 + $0x20] sm:$0xf]
        %v719 = vld [vmem:[%s504 + $0x24] sm:$0xf]
        %v720 = vld [vmem:[%s504 + $0x28] sm:$0xf]
        %v721 = vld [vmem:[%s504 + $0x2c] sm:$0xf]
        %v722 = vld [vmem:[%s504 + $0x30] sm:$0xf]
        %v723 = vld [vmem:[%s504 + $0x34] sm:$0xf]
        %v724 = vld [vmem:[%s504 + $0x38] sm:$0xf]
        %v725 = vld [vmem:[%s504 + $0x3c] sm:$0xf]
        %v742 = vunpack.c.l.b16 %v710
        %v743 = vunpack.c.l.b16 %v711
        %v744 = vunpack.c.l.b16 %v712
        %v745 = vunpack.c.l.b16 %v713
        %v746 = vunpack.c.l.b16 %v714
        %v747 = vunpack.c.l.b16 %v715
        %v748 = vunpack.c.l.b16 %v716
        %v749 = vunpack.c.l.b16 %v717
        %v750 = vunpack.c.l.b16 %v718
        %v751 = vunpack.c.l.b16 %v719
        %v752 = vunpack.c.l.b16 %v720
        %v753 = vunpack.c.l.b16 %v721
        %v754 = vunpack.c.l.b16 %v722
        %v755 = vunpack.c.l.b16 %v723
        %v756 = vunpack.c.l.b16 %v724
        %v757 = vunpack.c.l.b16 %v725
        %v758 = vpack.c.b16 %v743, %v742
        %v759 = vpack.c.b16 %v745, %v744
        %v760 = vpack.c.b16 %v747, %v746
        %v761 = vpack.c.b16 %v749, %v748
        %v762 = vpack.c.b16 %v751, %v750
        %v763 = vpack.c.b16 %v753, %v752
        %v764 = vpack.c.b16 %v755, %v754
        %v765 = vpack.c.b16 %v757, %v756
        %v767 = vsel %vm642, %v578, 0
        %v770 = vsel %vm642, %v758, 0
        %v773 = vsel %vm642, %v759, 0
        %v776 = vsel %vm642, %v760, 0
        %v779 = vsel %vm642, %v761, 0
        %v782 = vsel %vm642, %v762, 0
        %v785 = vsel %vm642, %v763, 0
        %v788 = vsel %vm642, %v764, 0
        %v791 = vsel %vm642, %v765, 0
        %793 = vmatprep.subr.bf16.mxu0 0
        %794 = vmatpush1.bf16.xpose.msra.mxu0 %v791
        %795 = vmatprep.subr.bf16.mxu0 0
        %796 = vmatpush1.bf16.xpose.msra.mxu0 %v788
        %797 = vmatprep.subr.bf16.mxu0 0
        %798 = vmatpush1.bf16.xpose.msra.mxu0 %v785
        %799 = vmatprep.subr.bf16.mxu0 0
        %800 = vmatpush1.bf16.xpose.msra.mxu0 %v782
        %801 = vmatprep.subr.bf16.mxu0 0
        %802 = vmatpush1.bf16.xpose.msra.mxu0 %v779
        %803 = vmatprep.subr.bf16.mxu0 0
        %804 = vmatpush1.bf16.xpose.msra.mxu0 %v776
        %805 = vmatprep.subr.bf16.mxu0 0
        %806 = vmatpush1.bf16.xpose.msra.mxu0 %v773
        %807 = vmatprep.subr.bf16.mxu0 0
        %808 = vmatpush1.bf16.xpose.msra.mxu0 %v770
        %809 = vmatprep.subr.bf16.mxu0 0
        %810 = vmatpush2.bf16.xpose.msra.mxu0 0
        %811 = vmatprep.subr.bf16.mxu0 0
        %812 = vmatpush2.bf16.xpose.msra.mxu0 0
        %813 = vmatprep.subr.bf16.mxu0 0
        %814 = vmatpush2.bf16.xpose.msra.mxu0 0
        %815 = vmatprep.subr.bf16.mxu0 0
        %816 = vmatpush2.bf16.xpose.msra.mxu0 0
        %817 = vmatprep.subr.bf16.mxu0 0
        %818 = vmatpush2.bf16.xpose.msra.mxu0 0
        %819 = vmatprep.subr.bf16.mxu0 0
        %820 = vmatpush2.bf16.xpose.msra.mxu0 0
        %821 = vmatprep.subr.bf16.mxu0 0
        %822 = vmatpush2.bf16.xpose.msra.mxu0 0
        %823 = vmatprep.subr.bf16.mxu0 0
        %824 = vmatpush2.bf16.xpose.msra.mxu0 0
        %825 = vmatprep.mubr.bf16.mxu0 0
        %826 = vmatmul.mubr.bf16.gmra.mxu0 %v767
        %v827 = vpop.f32.mrf.mxu0
        %v828 = vadd.f32 0.0, %v827
        %v829 = vpop.f32.mrf.mxu0
        %v830 = vpop.f32.mrf.mxu0
        %v831 = vpop.f32.mrf.mxu0
        %832 = vdwg.mxu0
        %v833 = vmul.f32 %v705, %v705
        %v834 = vmul.f32 %v833, 0.044715
        %v835 = vmul.f32 %v834, %v705
        %v836 = vadd.f32 %v705, %v835
        %v837 = vmul.f32 %v836, 0.7978846
        %v838 = vtanh.pop %v837
        %v839 = vmul.f32 %v705, 0.5
        %v840 = vadd.f32 %v838, 1.0
        %v841 = vmul.f32 %v839, %v840
        %v842 = vmul.f32 %v833, 0.134145
        %v843 = vadd.f32 %v842, 1.0
        %v844 = vmul.f32 %v843, 0.7978846
        %v845 = vmul.f32 %v840, 0.5
        %v846 = vmul.f32 %v838, %v838
        %v847 = vsub.f32 1.0, %v846
        %v848 = vmul.f32 %v839, %v847
        %v849 = vmul.f32 %v848, %v844
        %v850 = vadd.f32 %v845, %v849
        %v851 = vmul.f32 %v850, %v850
        %v852 = vmul.f32 %v851, %v828
        %v853 = vld [vmem:[%s475] sm:$0xff]
        %v854 = vpack.c.bf16 %v841, %v841
        %v855 = vld [vmem:[%s509] sm:$0xf]
        %v856 = vld [vmem:[%s509 + $0x4] sm:$0xf]
        %v857 = vld [vmem:[%s509 + $0x8] sm:$0xf]
        %v858 = vld [vmem:[%s509 + $0xc] sm:$0xf]
        %v863 = vunpack.c.l.b16 %v855
        %v864 = vunpack.c.l.b16 %v856
        %v865 = vunpack.c.l.b16 %v857
        %v866 = vunpack.c.l.b16 %v858
        %v867 = vpack.c.b16 %v864, %v863
        %v868 = vpack.c.b16 %v866, %v865
        %871 = vmatprep.subr.bf16.mxu0 0
        %872 = vmatpush1.bf16.xpose.msra.mxu0 0
        %873 = vmatprep.subr.bf16.mxu0 0
        %874 = vmatpush1.bf16.xpose.msra.mxu0 0
        %875 = vmatprep.subr.bf16.mxu0 0
        %876 = vmatpush1.bf16.xpose.msra.mxu0 0
        %877 = vmatprep.subr.bf16.mxu0 0
        %878 = vmatpush1.bf16.xpose.msra.mxu0 0
        %879 = vmatprep.subr.bf16.mxu0 0
        %880 = vmatpush1.bf16.xpose.msra.mxu0 0
        %881 = vmatprep.subr.bf16.mxu0 0
        %882 = vmatpush1.bf16.xpose.msra.mxu0 0
        %883 = vmatprep.subr.bf16.mxu0 0
        %884 = vmatpush1.bf16.xpose.msra.mxu0 %v868
        %885 = vmatprep.subr.bf16.mxu0 0
        %886 = vmatpush1.bf16.xpose.msra.mxu0 %v867
        %887 = vmatprep.subr.bf16.mxu0 0
        %888 = vmatpush2.bf16.xpose.msra.mxu0 0
        %889 = vmatprep.subr.bf16.mxu0 0
        %890 = vmatpush2.bf16.xpose.msra.mxu0 0
        %891 = vmatprep.subr.bf16.mxu0 0
        %892 = vmatpush2.bf16.xpose.msra.mxu0 0
        %893 = vmatprep.subr.bf16.mxu0 0
        %894 = vmatpush2.bf16.xpose.msra.mxu0 0
        %895 = vmatprep.subr.bf16.mxu0 0
        %896 = vmatpush2.bf16.xpose.msra.mxu0 0
        %897 = vmatprep.subr.bf16.mxu0 0
        %898 = vmatpush2.bf16.xpose.msra.mxu0 0
        %899 = vmatprep.subr.bf16.mxu0 0
        %900 = vmatpush2.bf16.xpose.msra.mxu0 0
        %901 = vmatprep.subr.bf16.mxu0 0
        %902 = vmatpush2.bf16.xpose.msra.mxu0 0
        %903 = vmatprep.mubr.bf16.mxu0 0
        %904 = vmatmul.mubr.bf16.gmra.mxu0 %v854
        %v905 = vpop.f32.mrf.mxu0
        %v906 = vadd.f32 0.0, %v905
        %v907 = vpop.f32.mrf.mxu0
        %v908 = vpop.f32.mrf.mxu0
        %v909 = vpop.f32.mrf.mxu0
        %910 = vdwg.mxu0
        %v911 = vadd.f32 %v853, %v906
        %912 = vst.msk [vmem:[%s475] sm:$0xff] %vm642, %v911
        %v913 = vld [vmem:[%s482] sm:$0xff]
        %v914 = vpack.c.bf16 %v852, %v852
        %v915 = vld [vmem:[%s513] sm:$0xf]
        %v916 = vld [vmem:[%s513 + $0x4] sm:$0xf]
        %v917 = vld [vmem:[%s513 + $0x8] sm:$0xf]
        %v918 = vld [vmem:[%s513 + $0xc] sm:$0xf]
        %v923 = vunpack.c.l.b16 %v915
        %v924 = vunpack.c.l.b16 %v916
        %v925 = vunpack.c.l.b16 %v917
        %v926 = vunpack.c.l.b16 %v918
        %v927 = vpack.c.b16 %v924, %v923
        %v928 = vpack.c.b16 %v926, %v925
        %931 = vmatprep.subr.bf16.mxu0 0
        %932 = vmatpush1.bf16.xpose.msra.mxu0 0
        %933 = vmatprep.subr.bf16.mxu0 0
        %934 = vmatpush1.bf16.xpose.msra.mxu0 0
        %935 = vmatprep.subr.bf16.mxu0 0
        %936 = vmatpush1.bf16.xpose.msra.mxu0 0
        %937 = vmatprep.subr.bf16.mxu0 0
        %938 = vmatpush1.bf16.xpose.msra.mxu0 0
        %939 = vmatprep.subr.bf16.mxu0 0
        %940 = vmatpush1.bf16.xpose.msra.mxu0 0
        %941 = vmatprep.subr.bf16.mxu0 0
        %942 = vmatpush1.bf16.xpose.msra.mxu0 0
        %943 = vmatprep.subr.bf16.mxu0 0
        %944 = vmatpush1.bf16.xpose.msra.mxu0 %v928
        %945 = vmatprep.subr.bf16.mxu0 0
        %946 = vmatpush1.bf16.xpose.msra.mxu0 %v927
        %947 = vmatprep.subr.bf16.mxu0 0
        %948 = vmatpush2.bf16.xpose.msra.mxu0 0
        %949 = vmatprep.subr.bf16.mxu0 0
        %950 = vmatpush2.bf16.xpose.msra.mxu0 0
        %951 = vmatprep.subr.bf16.mxu0 0
        %952 = vmatpush2.bf16.xpose.msra.mxu0 0
        %953 = vmatprep.subr.bf16.mxu0 0
        %954 = vmatpush2.bf16.xpose.msra.mxu0 0
        %955 = vmatprep.subr.bf16.mxu0 0
        %956 = vmatpush2.bf16.xpose.msra.mxu0 0
        %957 = vmatprep.subr.bf16.mxu0 0
        %958 = vmatpush2.bf16.xpose.msra.mxu0 0
        %959 = vmatprep.subr.bf16.mxu0 0
        %960 = vmatpush2.bf16.xpose.msra.mxu0 0
        %961 = vmatprep.subr.bf16.mxu0 0
        %962 = vmatpush2.bf16.xpose.msra.mxu0 0
        %963 = vmatprep.mubr.bf16.mxu0 0
        %964 = vmatmul.mubr.bf16.gmra.mxu0 %v914
        %v965 = vpop.f32.mrf.mxu0
        %v966 = vadd.f32 0.0, %v965
        %v967 = vpop.f32.mrf.mxu0
        %v968 = vpop.f32.mrf.mxu0
        %v969 = vpop.f32.mrf.mxu0
        %970 = vdwg.mxu0
        %v971 = vadd.f32 %v913, %v966
        %972 = vst.msk [vmem:[%s482] sm:$0xff] %vm642, %v971
        %s973 = sand.u32 %s294, 1
        %s974 = scalar_lea.sflag [#allocation5], %s973
        %s975 = sand.u32 %s294, 1
        %s976 = smul.addr %s975, 8
        %s977 = scalar_lea.vmem [#allocation4], %s976
        %s978 = sand.u32 %s320, 1
        %s979 = scalar_lea.sflag [#allocation7], %s978
        %s980 = sand.u32 %s320, 1
        %s981 = smul.addr %s980, 8
        %s982 = scalar_lea.vmem [#allocation6], %s981
        // Predicated region
        $region65: #{suq_transformer_block.3} parent=59 // pred_check
          %p983 = pneg %p304
        $region66: #{suq_transformer_block.3} parent=59 // pred_check_branch
          %985 = sbr.rel (%p983) target = $region68
        $region67: #{suq_transformer_block.3} parent=59 // pred_region
          %s987 = ssub.s32 128, 128
          %988 = vsyncadd %s974, %s987
          %s989 = smul.addr %s33, 128
          %s990 = scalar_lea.hbm %s10, %s989
          %s992 = sshll.u32 %s977, 4
          %s993 = int_to_ptr.vmem [resolvable:$true] %s992
          %995 = dma.vmem_to_hbm [thread:$0]  %s993, 128, %s990, %s974
        $region68: #{suq_transformer_block.3} parent=59 // pred_fallthru
          _
        // Predicated region
        $region69: #{suq_transformer_block.3} parent=59 // pred_check
          %p996 = pneg %p330
        $region70: #{suq_transformer_block.3} parent=59 // pred_check_branch
          %998 = sbr.rel (%p996) target = $region72
        $region71: #{suq_transformer_block.3} parent=59 // pred_region
          %s1000 = ssub.s32 128, 128
          %1001 = vsyncadd %s979, %s1000
          %s1002 = smul.addr %s33, 128
          %s1003 = scalar_lea.hbm %s11, %s1002
          %s1005 = sshll.u32 %s982, 4
          %s1006 = int_to_ptr.vmem [resolvable:$true] %s1005
          %1008 = dma.vmem_to_hbm [thread:$0]  %s1006, 128, %s1003, %s979
        $region72: #{suq_transformer_block.3} parent=59 // pred_fallthru
          _
      $region60: #{suq_transformer_block.3} parent=5 // pred_fallthru
        _
      %p1009 = scmp.le.s32.totalorder 2, %s24
      // Predicated region
      $region73: #{suq_transformer_block.3} parent=5 // pred_check
        %p1010 = pneg %p1009
      $region74: #{suq_transformer_block.3} parent=5 // pred_check_branch
        %1012 = sbr.rel (%p1010) target = $region76
      $region75: #{suq_transformer_block.3} parent=5 // pred_region
        %s1013 = ssub.s32 %s24, 2
        // Predicated region
        $region77: #{suq_transformer_block.3} parent=75 // pred_check
          %p1014 = pneg %p310
        $region78: #{suq_transformer_block.3} parent=75 // pred_check_branch
          %1016 = sbr.rel (%p1014) target = $region80
        $region79: #{suq_transformer_block.3} parent=75 // pred_region
          %s1017 = sand.u32 %s295, 1
          %s1018 = scalar_lea.sflag [#allocation5], %s1017
          %s1019 = sand.u32 %s295, 1
          %s1020 = smul.addr %s1019, 8
          %s1021 = scalar_lea.vmem [#allocation4], %s1020
          %1022 = dma.done %s1018, 128
        $region80: #{suq_transformer_block.3} parent=75 // pred_fallthru
          _
        // Predicated region
        $region81: #{suq_transformer_block.3} parent=75 // pred_check
          %p1023 = pneg %p336
        $region82: #{suq_transformer_block.3} parent=75 // pred_check_branch
          %1025 = sbr.rel (%p1023) target = $region84
        $region83: #{suq_transformer_block.3} parent=75 // pred_region
          %s1026 = sand.u32 %s321, 1
          %s1027 = scalar_lea.sflag [#allocation7], %s1026
          %s1028 = sand.u32 %s321, 1
          %s1029 = smul.addr %s1028, 8
          %s1030 = scalar_lea.vmem [#allocation6], %s1029
          %1031 = dma.done %s1027, 128
        $region84: #{suq_transformer_block.3} parent=75 // pred_fallthru
          _
      $region76: #{suq_transformer_block.3} parent=5 // pred_fallthru
        _
    $region6: #{suq_transformer_block.3} parent=1 // loop_footer
      %s28 = sadd.s32 1, %s24
    $region7: #{suq_transformer_block.3} parent=1 // loop_footer_branch
      %23 = sbr.rel target = $region3
    $region8: #{suq_transformer_block.3} parent=1 // loop_exit
      _
    %1032 = vsyncpa [#allocation5], 1
    %s1033 = scalar_lea.sflag [#allocation5], 1
    %1034 = vsyncpa %s1033, 1
    %1035 = vsyncpa [#allocation7], 1
    %s1036 = scalar_lea.sflag [#allocation7], 1
    %1037 = vsyncpa %s1036, 1

</llo_original>
